<compile_context>
chip_gen: v5e
topology: v5e:2x2
jax: 0.10.0
libtpu: 0.0.40
codegen_flags: <defaults>
</compile_context>

<pallas_src>
import jax
import jax.numpy as jnp
import numpy as np
from jax.experimental import pallas as pl
from jax.experimental.pallas import tpu as pltpu

L = 100               # sequence length implied by fc = Linear(64 * 25, 2)
C_IN = 4
C1, K1, P1 = 32, 5, 2
C2, K2, P2 = 64, 3, 1
L1 = L // 2           # 50 after first pool
L2 = L1 // 2          # 25 after second pool
R1 = 32               # padded pooled rows per sample (valid rows: 0..24)
N_CLASSES = 2
FEAT1 = K1 * C_IN     # 20 im2col features per position
SLAB = 4 * FEAT1      # 80 features per kernel row (4 positions x 20)
LANES = 128


def dna_kernel(x_ref, w1_ref, b1_ref, w2_ref, b2_ref, wfc_ref, bfc_ref, out_ref):
    tb = out_ref.shape[0]
    n = tb * R1
    f32 = jnp.float32

    # ---- conv1: one block-diagonal matmul -> lanes [c0 | c2 | c1 | c3] ----
    c = jnp.dot(x_ref[...], w1_ref[...], preferred_element_type=f32)          # (n,128)

    # ---- pool1 (64-lane roll + max) + bias + ReLU + row-validity mask ----
    m1 = jnp.maximum(c, pltpu.roll(c, shift=64, axis=1))                      # [pe|po|pe|po]
    ridx = jax.lax.broadcasted_iota(jnp.int32, (n, LANES), 0)
    valid = jnp.bitwise_and(ridx, R1 - 1) < L2                                # row-in-sample < 25
    p = jnp.where(valid, jnp.maximum(m1 + b1_ref[...], 0.0), 0.0)             # (n,128)

    # ---- conv2 input [po_{i-1} | pe_i | po_i | pe_{i+1}] via XLU rolls ----
    a = pltpu.roll(p, shift=32, axis=1)                                       # [po|pe|po|pe]
    a_prev = pltpu.roll(a, shift=1, axis=0)       # row i <- row i-1 (wrap row is masked zero)
    a_next = pltpu.roll(a, shift=n - 1, axis=0)   # row i <- row i+1 (== shift -1)
    lidx = jax.lax.broadcasted_iota(jnp.int32, (n, LANES), 1)
    conv2in = jnp.where(lidx < 32, a_prev, jnp.where(lidx < 96, a, a_next))

    # ---- conv2: one (n,128)@(128,128) matmul -> [h2e | h2o]; pool2 + bias + ReLU ----
    h = jnp.dot(conv2in, w2_ref[...], preferred_element_type=f32)             # (n,128)
    p2 = jnp.maximum(jnp.maximum(h, pltpu.roll(h, shift=64, axis=1))
                     + b2_ref[...], 0.0)                                      # (n,128) [P2|P2]

    # ---- FC: lane-packed weighted reduction (flatten order baked into wfc) ----
    prod = p2.reshape(tb, R1, LANES) * wfc_ref[...][None, :, :]               # wfc rows>=25 are 0
    s = jnp.sum(prod, axis=1)                                                 # (tb,128)
    s0 = jnp.sum(s[:, :C2], axis=1, keepdims=True)                            # class 0
    s1 = jnp.sum(s[:, C2:], axis=1, keepdims=True)                            # class 1
    lane2 = jax.lax.broadcasted_iota(jnp.int32, (tb, N_CLASSES), 1)
    out_ref[...] = jnp.where(lane2 == 0, s0, s1) + bfc_ref[...]


def dna_classifier_forward(x, params):
    """x: (B, 4, 100) float32 in PyTorch NCL layout. Returns (B, 2) logits."""
    w1, b1, w2, b2, wfc, bfc = params                 # PyTorch param layouts
    B = x.shape[0]
    if B <= 16:
        TB = 8
    elif B <= 32:
        TB = 16
    elif B <= 512:
        TB = 32
    else:
        TB = 128
    grid = max(pl.cdiv(B, TB), 2)      # grid >= 2 so v7x's two TensorCores both work
    Bp = grid * TB

    # im2col for conv1 (feature index = tap*4 + channel), merged into one (Bp*32, 80) slab
    xcl = jnp.transpose(x, (0, 2, 1)).astype(jnp.float32)                       # (B,100,4)
    xpad = jnp.pad(xcl, ((0, 0), (P1, P1), (0, 0)))                             # (B,104,4)
    xcol = jnp.concatenate([xpad[:, k:k + L, :] for k in range(K1)], axis=-1)   # (B,100,20)
    if Bp != B:
        xcol = jnp.pad(xcol, ((0, Bp - B), (0, 0), (0, 0)))
    xslab = xcol.reshape(Bp, L2, SLAB)                       # row i = positions 4i..4i+3
    xslab = jnp.pad(xslab, ((0, 0), (0, R1 - L2), (0, 0))).reshape(Bp * R1, SLAB)

    # conv1 block-diagonal weight; column blocks ordered [c0 | c2 | c1 | c3]
    w1k = jnp.transpose(w1, (2, 1, 0)).reshape(FEAT1, C1)                       # (20,32)
    col_off = (0, 64, 32, 96)            # position stream r -> lane offset
    w1big = jnp.zeros((SLAB, LANES), jnp.float32)
    for r in range(4):
        w1big = w1big.at[r * FEAT1:(r + 1) * FEAT1,
                         col_off[r]:col_off[r] + C1].set(w1k)

    # conv2 packed weight: cols 0:64 = h2e taps, cols 64:128 = h2o taps
    w2k = jnp.transpose(w2, (2, 1, 0))                                          # (3,32,64)
    w2big = jnp.zeros((LANES, LANES), jnp.float32)
    for k in range(K2):
        w2big = w2big.at[k * C1:(k + 1) * C1, 0:C2].set(w2k[k])
        w2big = w2big.at[(k + 1) * C1:(k + 2) * C1, C2:2 * C2].set(w2k[k])

    # FC weight in PyTorch flatten order, rows >= 25 zeroed, classes lane-packed
    wfck = wfc.reshape(N_CLASSES, C2, L2).transpose(0, 2, 1)                    # (2,25,64)
    wfck = jnp.pad(wfck, ((0, 0), (0, R1 - L2), (0, 0)))                        # (2,32,64)
    wfcpack = jnp.concatenate([wfck[0], wfck[1]], axis=-1)                      # (32,128)

    b1k = jnp.tile(b1, 4).reshape(1, LANES)
    b2k = jnp.tile(b2, 2).reshape(1, LANES)
    bfck = bfc.reshape(1, N_CLASSES)

    out = pl.pallas_call(
        dna_kernel,
        out_shape=jax.ShapeDtypeStruct((Bp, N_CLASSES), jnp.float32),
        grid=(grid,),
        in_specs=[
            pl.BlockSpec((TB * R1, SLAB), lambda i: (i, 0)),
            pl.BlockSpec((SLAB, LANES), lambda i: (0, 0)),
            pl.BlockSpec((1, LANES), lambda i: (0, 0)),
            pl.BlockSpec((LANES, LANES), lambda i: (0, 0)),
            pl.BlockSpec((1, LANES), lambda i: (0, 0)),
            pl.BlockSpec((R1, LANES), lambda i: (0, 0)),
            pl.BlockSpec((1, N_CLASSES), lambda i: (0, 0)),
        ],
        out_specs=pl.BlockSpec((TB, N_CLASSES), lambda i: (i, 0)),
        compiler_params=pltpu.CompilerParams(
            dimension_semantics=("parallel",),
            vmem_limit_bytes=40 * 1024 * 1024),
    )(xslab, w1big, b1k, w2big, b2k, wfcpack, bfck)
    return out[:B]


def init_params(key):
    """Deterministic synthetic parameters with PyTorch layouts."""
    ks = jax.random.split(key, 6)
    w1 = jax.random.normal(ks[0], (C1, C_IN, K1), jnp.float32) * 0.10
    b1 = jax.random.normal(ks[1], (C1,), jnp.float32) * 0.10
    w2 = jax.random.normal(ks[2], (C2, C1, K2), jnp.float32) * 0.05
    b2 = jax.random.normal(ks[3], (C2,), jnp.float32) * 0.05
    wfc = jax.random.normal(ks[4], (N_CLASSES, C2 * L2), jnp.float32) * 0.02
    bfc = jax.random.normal(ks[5], (N_CLASSES,), jnp.float32) * 0.02
    return (w1, b1, w2, b2, wfc, bfc)


def ref_forward(x, params):
    """Pure-JAX reference matching the PyTorch forward pass."""
    w1, b1, w2, b2, wfc, bfc = params
    dn = ("NCH", "OIH", "NCH")
    y = jax.lax.conv_general_dilated(x, w1, (1,), ((P1, P1),),
                                     dimension_numbers=dn)
    y = jax.nn.relu(y + b1[None, :, None])
    y = jax.lax.reduce_window(y, -jnp.inf, jax.lax.max,
                              (1, 1, 2), (1, 1, 2), "VALID")
    y = jax.lax.conv_general_dilated(y, w2, (1,), ((P2, P2),),
                                     dimension_numbers=dn)
    y = jax.nn.relu(y + b2[None, :, None])
    y = jax.lax.reduce_window(y, -jnp.inf, jax.lax.max,
                              (1, 1, 2), (1, 1, 2), "VALID")
    y = y.reshape(y.shape[0], -1)
    return y @ wfc.T + bfc[None, :]


if __name__ == "__main__":
    key = jax.random.PRNGKey(0)
    kx, kp = jax.random.split(key)
    params = init_params(kp)

    # small primary test (batch=2): TB=8, grid=2, heavy batch padding exercised
    x = jax.random.normal(kx, (2, C_IN, L), jnp.float32)
    out = jax.block_until_ready(dna_classifier_forward(x, params))
    ref = ref_forward(x, params)
    np.testing.assert_allclose(np.asarray(out), np.asarray(ref),
                               rtol=2e-3, atol=2e-3)

    # batched-grid test (TB=32 tiles, batch padding, 2-step grid)
    xb = jax.random.normal(jax.random.PRNGKey(1), (40, C_IN, L), jnp.float32)
    outb = jax.block_until_ready(dna_classifier_forward(xb, params))
    refb = ref_forward(xb, params)
    np.testing.assert_allclose(np.asarray(outb), np.asarray(refb),
                               rtol=2e-3, atol=2e-3)

    print("KERNEL_OK")
</pallas_src>

<mosaic_0001>
module attributes {stable_mosaic.version = 11 : i64} {
  func.func @dna_kernel(%arg0: i32, %arg1: memref<256x80xf32, #tpu.memory_space<vmem>>, %arg2: memref<80x128xf32, #tpu.memory_space<vmem>>, %arg3: memref<1x128xf32, #tpu.memory_space<vmem>>, %arg4: memref<128x128xf32, #tpu.memory_space<vmem>>, %arg5: memref<1x128xf32, #tpu.memory_space<vmem>>, %arg6: memref<32x128xf32, #tpu.memory_space<vmem>>, %arg7: memref<1x2xf32, #tpu.memory_space<vmem>>, %arg8: memref<8x2xf32, #tpu.memory_space<vmem>>) attributes {dimension_semantics = [#tpu.dimension_semantics<parallel>], iteration_bounds = array<i64: 2>, scalar_prefetch = 0 : i64, scratch_operands = 0 : i64, tpu.core_type = #tpu.core_type<tc>, window_params = [{transform_indices = @transform_0, window_bounds = array<i64: 256, 80>}, {pipeline_mode = #tpu.pipeline_mode<synchronous>, transform_indices = @transform_1, window_bounds = array<i64: 80, 128>}, {pipeline_mode = #tpu.pipeline_mode<synchronous>, transform_indices = @transform_2, window_bounds = array<i64: 1, 128>}, {pipeline_mode = #tpu.pipeline_mode<synchronous>, transform_indices = @transform_3, window_bounds = array<i64: 128, 128>}, {pipeline_mode = #tpu.pipeline_mode<synchronous>, transform_indices = @transform_4, window_bounds = array<i64: 1, 128>}, {pipeline_mode = #tpu.pipeline_mode<synchronous>, transform_indices = @transform_5, window_bounds = array<i64: 32, 128>}, {pipeline_mode = #tpu.pipeline_mode<synchronous>, transform_indices = @transform_6, window_bounds = array<i64: 1, 2>}, {transform_indices = @transform_7, window_bounds = array<i64: 8, 2>}]} {
    %c0 = arith.constant 0 : index
    %c0_0 = arith.constant 0 : index
    %0 = vector.load %arg1[%c0, %c0_0] : memref<256x80xf32, #tpu.memory_space<vmem>>, vector<256x80xf32>
    %c0_1 = arith.constant 0 : index
    %c0_2 = arith.constant 0 : index
    %1 = vector.load %arg2[%c0_1, %c0_2] : memref<80x128xf32, #tpu.memory_space<vmem>>, vector<80x128xf32>
    %cst = arith.constant dense<0.000000e+00> : vector<256x128xf32>
    %2 = tpu.matmul %0, %1, %cst {dimension_numbers = #tpu.dot_dimension_numbers<[1], [0], [0], [1], [0, 0, 1, 1], [], []>} : vector<256x80xf32>, vector<80x128xf32>, vector<256x128xf32> -> vector<256x128xf32>
    %c64_i32 = arith.constant 64 : i32
    %3 = tpu.dynamic_rotate %2 by %c64_i32 dim 1 : vector<256x128xf32>, i32 -> vector<256x128xf32>
    %4 = arith.maximumf %2, %3 : vector<256x128xf32>
    %5 = tpu.iota {dimensions = array<i32: 0>} : vector<256x128xi32>
    %c31_i32 = arith.constant 31 : i32
    %6 = vector.broadcast %c31_i32 : i32 to vector<256x128xi32>
    %7 = arith.andi %5, %6 : vector<256x128xi32>
    %c25_i32 = arith.constant 25 : i32
    %8 = vector.broadcast %c25_i32 : i32 to vector<256x128xi32>
    %9 = arith.cmpi slt, %7, %8 : vector<256x128xi32>
    %c0_3 = arith.constant 0 : index
    %c0_4 = arith.constant 0 : index
    %10 = vector.load %arg3[%c0_3, %c0_4] : memref<1x128xf32, #tpu.memory_space<vmem>>, vector<1x128xf32>
    %11 = vector.broadcast %10 : vector<1x128xf32> to vector<256x128xf32>
    %12 = arith.addf %4, %11 : vector<256x128xf32>
    %cst_5 = arith.constant 0.000000e+00 : f32
    %13 = vector.broadcast %cst_5 : f32 to vector<256x128xf32>
    %14 = arith.maximumf %12, %13 : vector<256x128xf32>
    %cst_6 = arith.constant 0.000000e+00 : f32
    %15 = vector.broadcast %cst_6 : f32 to vector<256x128xf32>
    %16 = arith.select %9, %14, %15 : vector<256x128xi1>, vector<256x128xf32>
    %c32_i32 = arith.constant 32 : i32
    %17 = tpu.dynamic_rotate %16 by %c32_i32 dim 1 : vector<256x128xf32>, i32 -> vector<256x128xf32>
    %c1_i32 = arith.constant 1 : i32
    %18 = tpu.dynamic_rotate %17 by %c1_i32 dim 0 : vector<256x128xf32>, i32 -> vector<256x128xf32>
    %c255_i32 = arith.constant 255 : i32
    %19 = tpu.dynamic_rotate %17 by %c255_i32 dim 0 : vector<256x128xf32>, i32 -> vector<256x128xf32>
    %20 = tpu.iota {dimensions = array<i32: 1>} : vector<256x128xi32>
    %c32_i32_7 = arith.constant 32 : i32
    %21 = vector.broadcast %c32_i32_7 : i32 to vector<256x128xi32>
    %22 = arith.cmpi slt, %20, %21 : vector<256x128xi32>
    %c96_i32 = arith.constant 96 : i32
    %23 = vector.broadcast %c96_i32 : i32 to vector<256x128xi32>
    %24 = arith.cmpi slt, %20, %23 : vector<256x128xi32>
    %25 = arith.select %24, %17, %19 : vector<256x128xi1>, vector<256x128xf32>
    %26 = arith.select %22, %18, %25 : vector<256x128xi1>, vector<256x128xf32>
    %c0_8 = arith.constant 0 : index
    %c0_9 = arith.constant 0 : index
    %27 = vector.load %arg4[%c0_8, %c0_9] : memref<128x128xf32, #tpu.memory_space<vmem>>, vector<128x128xf32>
    %cst_10 = arith.constant dense<0.000000e+00> : vector<256x128xf32>
    %28 = tpu.matmul %26, %27, %cst_10 {dimension_numbers = #tpu.dot_dimension_numbers<[1], [0], [0], [1], [0, 0, 1, 1], [], []>} : vector<256x128xf32>, vector<128x128xf32>, vector<256x128xf32> -> vector<256x128xf32>
    %c64_i32_11 = arith.constant 64 : i32
    %29 = tpu.dynamic_rotate %28 by %c64_i32_11 dim 1 : vector<256x128xf32>, i32 -> vector<256x128xf32>
    %30 = arith.maximumf %28, %29 : vector<256x128xf32>
    %c0_12 = arith.constant 0 : index
    %c0_13 = arith.constant 0 : index
    %31 = vector.load %arg5[%c0_12, %c0_13] : memref<1x128xf32, #tpu.memory_space<vmem>>, vector<1x128xf32>
    %32 = vector.broadcast %31 : vector<1x128xf32> to vector<256x128xf32>
    %33 = arith.addf %30, %32 : vector<256x128xf32>
    %cst_14 = arith.constant 0.000000e+00 : f32
    %34 = vector.broadcast %cst_14 : f32 to vector<256x128xf32>
    %35 = arith.maximumf %33, %34 : vector<256x128xf32>
    %36 = vector.shape_cast %35 : vector<256x128xf32> to vector<8x32x128xf32>
    %c0_15 = arith.constant 0 : index
    %c0_16 = arith.constant 0 : index
    %37 = vector.load %arg6[%c0_15, %c0_16] : memref<32x128xf32, #tpu.memory_space<vmem>>, vector<32x128xf32>
    %38 = vector.shape_cast %37 : vector<32x128xf32> to vector<1x32x128xf32>
    %39 = vector.broadcast %38 : vector<1x32x128xf32> to vector<8x32x128xf32>
    %40 = arith.mulf %36, %39 : vector<8x32x128xf32>
    %cst_17 = arith.constant dense<0.000000e+00> : vector<8x128xf32>
    %41 = vector.multi_reduction <add>, %40, %cst_17 [1] : vector<8x32x128xf32> to vector<8x128xf32>
    %42 = vector.extract_strided_slice %41 {offsets = [0, 0], sizes = [8, 64], strides = [1, 1]} : vector<8x128xf32> to vector<8x64xf32>
    %cst_18 = arith.constant dense<0.000000e+00> : vector<8xf32>
    %43 = vector.multi_reduction <add>, %42, %cst_18 [1] : vector<8x64xf32> to vector<8xf32>
    %44 = vector.shape_cast %43 : vector<8xf32> to vector<8x1xf32>
    %45 = vector.extract_strided_slice %41 {offsets = [0, 64], sizes = [8, 64], strides = [1, 1]} : vector<8x128xf32> to vector<8x64xf32>
    %cst_19 = arith.constant dense<0.000000e+00> : vector<8xf32>
    %46 = vector.multi_reduction <add>, %45, %cst_19 [1] : vector<8x64xf32> to vector<8xf32>
    %47 = vector.shape_cast %46 : vector<8xf32> to vector<8x1xf32>
    %48 = tpu.iota {dimensions = array<i32: 1>} : vector<8x2xi32>
    %c0_i32 = arith.constant 0 : i32
    %49 = vector.broadcast %c0_i32 : i32 to vector<8x2xi32>
    %50 = arith.cmpi eq, %48, %49 : vector<8x2xi32>
    %51 = vector.shape_cast %44 : vector<8x1xf32> to vector<8x1xf32>
    %52 = vector.broadcast %51 : vector<8x1xf32> to vector<8x2xf32>
    %53 = vector.shape_cast %47 : vector<8x1xf32> to vector<8x1xf32>
    %54 = vector.broadcast %53 : vector<8x1xf32> to vector<8x2xf32>
    %55 = arith.select %50, %52, %54 : vector<8x2xi1>, vector<8x2xf32>
    %c0_20 = arith.constant 0 : index
    %c0_21 = arith.constant 0 : index
    %56 = vector.load %arg7[%c0_20, %c0_21] : memref<1x2xf32, #tpu.memory_space<vmem>>, vector<1x2xf32>
    %57 = vector.broadcast %56 : vector<1x2xf32> to vector<8x2xf32>
    %58 = arith.addf %55, %57 : vector<8x2xf32>
    %c0_22 = arith.constant 0 : index
    %c0_23 = arith.constant 0 : index
    %59 = vector.load %arg8[%c0_22, %c0_23] : memref<8x2xf32, #tpu.memory_space<vmem>>, vector<8x2xf32>
    tpu.vector_store %arg8[%c0_22, %c0_23], %58 {strides = array<i32>} : memref<8x2xf32, #tpu.memory_space<vmem>>, vector<8x2xf32>,
    return
  }
  func.func @transform_0(%arg0: i32) -> (i32, i32) {
    %c0_i32 = arith.constant 0 : i32
    %c0_i32_0 = arith.constant 0 : i32
    return %arg0, %c0_i32 : i32, i32
  }
  func.func @transform_1(%arg0: i32) -> (i32, i32) {
    %c0_i32 = arith.constant 0 : i32
    %c0_i32_0 = arith.constant 0 : i32
    %c0_i32_1 = arith.constant 0 : i32
    return %c0_i32, %c0_i32_0 : i32, i32
  }
  func.func @transform_2(%arg0: i32) -> (i32, i32) {
    %c0_i32 = arith.constant 0 : i32
    %c0_i32_0 = arith.constant 0 : i32
    %c0_i32_1 = arith.constant 0 : i32
    return %c0_i32, %c0_i32_0 : i32, i32
  }
  func.func @transform_3(%arg0: i32) -> (i32, i32) {
    %c0_i32 = arith.constant 0 : i32
    %c0_i32_0 = arith.constant 0 : i32
    %c0_i32_1 = arith.constant 0 : i32
    return %c0_i32, %c0_i32_0 : i32, i32
  }
  func.func @transform_4(%arg0: i32) -> (i32, i32) {
    %c0_i32 = arith.constant 0 : i32
    %c0_i32_0 = arith.constant 0 : i32
    %c0_i32_1 = arith.constant 0 : i32
    return %c0_i32, %c0_i32_0 : i32, i32
  }
  func.func @transform_5(%arg0: i32) -> (i32, i32) {
    %c0_i32 = arith.constant 0 : i32
    %c0_i32_0 = arith.constant 0 : i32
    %c0_i32_1 = arith.constant 0 : i32
    return %c0_i32, %c0_i32_0 : i32, i32
  }
  func.func @transform_6(%arg0: i32) -> (i32, i32) {
    %c0_i32 = arith.constant 0 : i32
    %c0_i32_0 = arith.constant 0 : i32
    %c0_i32_1 = arith.constant 0 : i32
    return %c0_i32, %c0_i32_0 : i32, i32
  }
  func.func @transform_7(%arg0: i32) -> (i32, i32) {
    %c0_i32 = arith.constant 0 : i32
    %c0_i32_0 = arith.constant 0 : i32
    return %arg0, %c0_i32 : i32, i32
  }
}

</mosaic_0001>

<llo_original>
// kernel: tpu_custom_call.1
$region0: #{tpu_custom_call.1}
  #allocation0 [shape = 'u32[]', space=smem, size = 0x4, offset = 0x4, fixed_abs, tag = 'smem constant byte address 0x4 - core index']
  #allocation1 [shape = 'u32[72,128]{1,0:T(1,128)}', space=vmem, size = 0x9000, scoped, tag = 'internal scratch']
  %s0 = inlined_call_operand.vmem [shape: f32[512,80], index: 0, kind: input, shape index: {}]
  %s1 = inlined_call_operand.vmem [shape: f32[80,128], index: 1, kind: input, shape index: {}]
  %s2 = inlined_call_operand.vmem [shape: f32[1,128], index: 2, kind: input, shape index: {}]
  %s3 = inlined_call_operand.vmem [shape: f32[128,128], index: 3, kind: input, shape index: {}]
  %s4 = inlined_call_operand.vmem [shape: f32[1,128], index: 4, kind: input, shape index: {}]
  %s5 = inlined_call_operand.vmem [shape: f32[32,128], index: 5, kind: input, shape index: {}]
  %s6 = inlined_call_operand.vmem [shape: f32[1,2], index: 6, kind: input, shape index: {}]
  %s7 = inlined_call_operand.vmem [shape: f32[16,2], index: 7, kind: output, shape index: {}]
  %s8 = sld [smem:[#allocation0]]
  $region61: #{tpu_custom_call.1} parent=0
    _
  %s10 = ssub.s32 1, %s8
  %s11 = scalar_select 0, %s10, %s8
  loop: start=0, step=1, limit=4
  $region2: #{tpu_custom_call.1} parent=0 // loop_pre_header
    _
  $region3: #{tpu_custom_call.1} parent=0 // loop_header
    %s13 = sphi 0, %s17
    %p14 = scmp.ge.s32.totalorder %s13, 4
    %s23 = sphi 0, %s25
    %s26 = sphi 0, %s23
    %s27 = sphi 0, %s26
    %s43 = sphi 0, %s27
    %s47 = sphi 0, %s47
    %s49 = sphi 0, %s47
    %s50 = sphi 0, %s49
    %s64 = sphi 0, %s50
    %s68 = sphi 0, %s68
    %s70 = sphi 0, %s68
    %s71 = sphi 0, %s70
    %s85 = sphi 0, %s71
    %s89 = sphi 0, %s89
    %s91 = sphi 0, %s89
    %s92 = sphi 0, %s91
    %s106 = sphi 0, %s92
    %s110 = sphi 0, %s110
    %s112 = sphi 0, %s110
    %s113 = sphi 0, %s112
    %s127 = sphi 0, %s113
    %s131 = sphi 0, %s131
    %s133 = sphi 0, %s131
    %s134 = sphi 0, %s133
    %s148 = sphi 0, %s134
    %s152 = sphi 0, %s152
    %s154 = sphi 0, %s152
    %s155 = sphi 0, %s154
    %s169 = sphi 0, %s155
    %s175 = sphi 0, %s177
    %s178 = sphi 0, %s175
    %s179 = sphi 0, %s178
    %s195 = sphi 0, %s179
  $region4: #{tpu_custom_call.1} parent=0 // loop_header_branch
    %16 = sbr.rel (%p14) target = $region8
  $region5: #{tpu_custom_call.1} parent=0 // loop_body
    %s18 = ssub.s32 %s13, 1
    %s19 = ssub.s32 %s13, 2
    %s20 = sadd.s32 %s13, 1
    %s21 = ssub.s32 %s13, %s20
    %p22 = scmp.eq.s32.totalorder %s21, 0
    %s24 = sadd.s32 %s23, 1
    %s25 = scalar_select %p22, %s23, %s24
    %p28 = pneg %p22
    %p29 = scmp.eq.s32.totalorder %s13, 1
    %p30 = por %p28, %p29
    %p31 = scmp.ne.s32.totalorder %s23, %s26
    %p32 = scmp.eq.s32.totalorder %s13, 0
    %p33 = por %p31, %p32
    %p34 = scmp.ne.s32.totalorder %s23, %s26
    %p35 = scmp.eq.s32.totalorder %s18, 1
    %p36 = por %p34, %p35
    %p37 = scmp.ne.s32.totalorder %s26, %s27
    %p38 = scmp.eq.s32.totalorder %s18, 0
    %p39 = por %p37, %p38
    %p40 = scmp.ne.s32.totalorder %s26, %s27
    %p41 = scmp.eq.s32.totalorder %s19, 1
    %p42 = por %p40, %p41
    %p44 = scmp.ne.s32.totalorder %s27, %s43
    %p45 = scmp.eq.s32.totalorder %s19, 0
    %p46 = por %p44, %p45
    %s48 = sadd.s32 %s47, 1
    %p51 = scmp.eq.s32.totalorder %s13, 1
    %p52 = scmp.ne.s32.totalorder %s47, %s49
    %p53 = scmp.eq.s32.totalorder %s13, 0
    %p54 = por %p52, %p53
    %p55 = scmp.ne.s32.totalorder %s47, %s49
    %p56 = scmp.eq.s32.totalorder %s18, 1
    %p57 = por %p55, %p56
    %p58 = scmp.ne.s32.totalorder %s49, %s50
    %p59 = scmp.eq.s32.totalorder %s18, 0
    %p60 = por %p58, %p59
    %p61 = scmp.ne.s32.totalorder %s49, %s50
    %p62 = scmp.eq.s32.totalorder %s19, 1
    %p63 = por %p61, %p62
    %p65 = scmp.ne.s32.totalorder %s50, %s64
    %p66 = scmp.eq.s32.totalorder %s19, 0
    %p67 = por %p65, %p66
    %s69 = sadd.s32 %s68, 1
    %p72 = scmp.eq.s32.totalorder %s13, 1
    %p73 = scmp.ne.s32.totalorder %s68, %s70
    %p74 = scmp.eq.s32.totalorder %s13, 0
    %p75 = por %p73, %p74
    %p76 = scmp.ne.s32.totalorder %s68, %s70
    %p77 = scmp.eq.s32.totalorder %s18, 1
    %p78 = por %p76, %p77
    %p79 = scmp.ne.s32.totalorder %s70, %s71
    %p80 = scmp.eq.s32.totalorder %s18, 0
    %p81 = por %p79, %p80
    %p82 = scmp.ne.s32.totalorder %s70, %s71
    %p83 = scmp.eq.s32.totalorder %s19, 1
    %p84 = por %p82, %p83
    %p86 = scmp.ne.s32.totalorder %s71, %s85
    %p87 = scmp.eq.s32.totalorder %s19, 0
    %p88 = por %p86, %p87
    %s90 = sadd.s32 %s89, 1
    %p93 = scmp.eq.s32.totalorder %s13, 1
    %p94 = scmp.ne.s32.totalorder %s89, %s91
    %p95 = scmp.eq.s32.totalorder %s13, 0
    %p96 = por %p94, %p95
    %p97 = scmp.ne.s32.totalorder %s89, %s91
    %p98 = scmp.eq.s32.totalorder %s18, 1
    %p99 = por %p97, %p98
    %p100 = scmp.ne.s32.totalorder %s91, %s92
    %p101 = scmp.eq.s32.totalorder %s18, 0
    %p102 = por %p100, %p101
    %p103 = scmp.ne.s32.totalorder %s91, %s92
    %p104 = scmp.eq.s32.totalorder %s19, 1
    %p105 = por %p103, %p104
    %p107 = scmp.ne.s32.totalorder %s92, %s106
    %p108 = scmp.eq.s32.totalorder %s19, 0
    %p109 = por %p107, %p108
    %s111 = sadd.s32 %s110, 1
    %p114 = scmp.eq.s32.totalorder %s13, 1
    %p115 = scmp.ne.s32.totalorder %s110, %s112
    %p116 = scmp.eq.s32.totalorder %s13, 0
    %p117 = por %p115, %p116
    %p118 = scmp.ne.s32.totalorder %s110, %s112
    %p119 = scmp.eq.s32.totalorder %s18, 1
    %p120 = por %p118, %p119
    %p121 = scmp.ne.s32.totalorder %s112, %s113
    %p122 = scmp.eq.s32.totalorder %s18, 0
    %p123 = por %p121, %p122
    %p124 = scmp.ne.s32.totalorder %s112, %s113
    %p125 = scmp.eq.s32.totalorder %s19, 1
    %p126 = por %p124, %p125
    %p128 = scmp.ne.s32.totalorder %s113, %s127
    %p129 = scmp.eq.s32.totalorder %s19, 0
    %p130 = por %p128, %p129
    %s132 = sadd.s32 %s131, 1
    %p135 = scmp.eq.s32.totalorder %s13, 1
    %p136 = scmp.ne.s32.totalorder %s131, %s133
    %p137 = scmp.eq.s32.totalorder %s13, 0
    %p138 = por %p136, %p137
    %p139 = scmp.ne.s32.totalorder %s131, %s133
    %p140 = scmp.eq.s32.totalorder %s18, 1
    %p141 = por %p139, %p140
    %p142 = scmp.ne.s32.totalorder %s133, %s134
    %p143 = scmp.eq.s32.totalorder %s18, 0
    %p144 = por %p142, %p143
    %p145 = scmp.ne.s32.totalorder %s133, %s134
    %p146 = scmp.eq.s32.totalorder %s19, 1
    %p147 = por %p145, %p146
    %p149 = scmp.ne.s32.totalorder %s134, %s148
    %p150 = scmp.eq.s32.totalorder %s19, 0
    %p151 = por %p149, %p150
    %s153 = sadd.s32 %s152, 1
    %p156 = scmp.eq.s32.totalorder %s13, 1
    %p157 = scmp.ne.s32.totalorder %s152, %s154
    %p158 = scmp.eq.s32.totalorder %s13, 0
    %p159 = por %p157, %p158
    %p160 = scmp.ne.s32.totalorder %s152, %s154
    %p161 = scmp.eq.s32.totalorder %s18, 1
    %p162 = por %p160, %p161
    %p163 = scmp.ne.s32.totalorder %s154, %s155
    %p164 = scmp.eq.s32.totalorder %s18, 0
    %p165 = por %p163, %p164
    %p166 = scmp.ne.s32.totalorder %s154, %s155
    %p167 = scmp.eq.s32.totalorder %s19, 1
    %p168 = por %p166, %p167
    %p170 = scmp.ne.s32.totalorder %s155, %s169
    %p171 = scmp.eq.s32.totalorder %s19, 0
    %p172 = por %p170, %p171
    %s173 = ssub.s32 %s13, %s20
    %p174 = scmp.eq.s32.totalorder %s173, 0
    %s176 = sadd.s32 %s175, 1
    %s177 = scalar_select %p174, %s175, %s176
    %p180 = pneg %p174
    %p181 = scmp.eq.s32.totalorder %s13, 1
    %p182 = por %p180, %p181
    %p183 = scmp.ne.s32.totalorder %s175, %s178
    %p184 = scmp.eq.s32.totalorder %s13, 0
    %p185 = por %p183, %p184
    %p186 = scmp.ne.s32.totalorder %s175, %s178
    %p187 = scmp.eq.s32.totalorder %s18, 1
    %p188 = por %p186, %p187
    %p189 = scmp.ne.s32.totalorder %s178, %s179
    %p190 = scmp.eq.s32.totalorder %s18, 0
    %p191 = por %p189, %p190
    %p192 = scmp.ne.s32.totalorder %s178, %s179
    %p193 = scmp.eq.s32.totalorder %s19, 1
    %p194 = por %p192, %p193
    %p196 = scmp.ne.s32.totalorder %s179, %s195
    %p197 = scmp.eq.s32.totalorder %s19, 0
    %p198 = por %p196, %p197
    %p199 = scmp.le.s32.totalorder 1, %s13
    %p200 = scmp.lt.s32.totalorder %s13, 3
    %p201 = pnand %p199, %p200
    %p202 = pneg %p201
    // Predicated region
    $region9: #{tpu_custom_call.1} parent=5 // pred_check
      _
    $region10: #{tpu_custom_call.1} parent=5 // pred_check_branch
      %204 = sbr.rel (%p201) target = $region12
    $region11: #{tpu_custom_call.1} parent=5 // pred_region
      %s205 = ssub.s32 %s13, 1
      // Predicated region
      $region13: #{tpu_custom_call.1} parent=11 // pred_check
        %p206 = pneg %p60
      $region14: #{tpu_custom_call.1} parent=11 // pred_check_branch
        %208 = sbr.rel (%p206) target = $region16
      $region15: #{tpu_custom_call.1} parent=11 // pred_region
        _
      $region16: #{tpu_custom_call.1} parent=11 // pred_fallthru
        _
      // Predicated region
      $region17: #{tpu_custom_call.1} parent=11 // pred_check
        %p209 = pneg %p81
      $region18: #{tpu_custom_call.1} parent=11 // pred_check_branch
        %211 = sbr.rel (%p209) target = $region20
      $region19: #{tpu_custom_call.1} parent=11 // pred_region
        _
      $region20: #{tpu_custom_call.1} parent=11 // pred_fallthru
        _
      // Predicated region
      $region21: #{tpu_custom_call.1} parent=11 // pred_check
        %p212 = pneg %p102
      $region22: #{tpu_custom_call.1} parent=11 // pred_check_branch
        %214 = sbr.rel (%p212) target = $region24
      $region23: #{tpu_custom_call.1} parent=11 // pred_region
        _
      $region24: #{tpu_custom_call.1} parent=11 // pred_fallthru
        _
      // Predicated region
      $region25: #{tpu_custom_call.1} parent=11 // pred_check
        %p215 = pneg %p123
      $region26: #{tpu_custom_call.1} parent=11 // pred_check_branch
        %217 = sbr.rel (%p215) target = $region28
      $region27: #{tpu_custom_call.1} parent=11 // pred_region
        _
      $region28: #{tpu_custom_call.1} parent=11 // pred_fallthru
        _
      // Predicated region
      $region29: #{tpu_custom_call.1} parent=11 // pred_check
        %p218 = pneg %p144
      $region30: #{tpu_custom_call.1} parent=11 // pred_check_branch
        %220 = sbr.rel (%p218) target = $region32
      $region31: #{tpu_custom_call.1} parent=11 // pred_region
        _
      $region32: #{tpu_custom_call.1} parent=11 // pred_fallthru
        _
      // Predicated region
      $region33: #{tpu_custom_call.1} parent=11 // pred_check
        %p221 = pneg %p165
      $region34: #{tpu_custom_call.1} parent=11 // pred_check_branch
        %223 = sbr.rel (%p221) target = $region36
      $region35: #{tpu_custom_call.1} parent=11 // pred_region
        _
      $region36: #{tpu_custom_call.1} parent=11 // pred_fallthru
        _
    $region12: #{tpu_custom_call.1} parent=5 // pred_fallthru
      _
    %p224 = scmp.lt.s32.totalorder %s13, 2
    // Predicated region
    $region37: #{tpu_custom_call.1} parent=5 // pred_check
      %p225 = pneg %p224
    $region38: #{tpu_custom_call.1} parent=5 // pred_check_branch
      %227 = sbr.rel (%p225) target = $region40
    $region39: #{tpu_custom_call.1} parent=5 // pred_region
      // Predicated region
      $region41: #{tpu_custom_call.1} parent=39 // pred_check
        %p228 = pneg %p33
      $region42: #{tpu_custom_call.1} parent=39 // pred_check_branch
        %230 = sbr.rel (%p228) target = $region44
      $region43: #{tpu_custom_call.1} parent=39 // pred_region
        %s231 = smul.u32 32, %s13
        %p232 = scmp.lt.s32.totalorder %s231, 63
        %s233 = scalar_select %p232, %s231, 63
        %s234 = smul.addr %s233, 8
        %s235 = scalar_lea.vmem %s0, %s234
        %s236 = smul.u32 32, %s13
      $region44: #{tpu_custom_call.1} parent=39 // pred_fallthru
        _
    $region40: #{tpu_custom_call.1} parent=5 // pred_fallthru
      _
    %p237 = scmp.le.s32.totalorder 1, %s13
    %p238 = scmp.lt.s32.totalorder %s13, 3
    %p239 = pnand %p237, %p238
    %p240 = pneg %p239
    // Predicated region
    $region45: #{tpu_custom_call.1} parent=5 // pred_check
      _
    $region46: #{tpu_custom_call.1} parent=5 // pred_check_branch
      %242 = sbr.rel (%p239) target = $region48
    $region47: #{tpu_custom_call.1} parent=5 // pred_region
      %s243 = ssub.s32 %s13, 1
      %s244 = smul.u32 32, %s18
      %p245 = scmp.lt.s32.totalorder %s244, 63
      %s246 = scalar_select %p245, %s244, 63
      %s247 = smul.addr %s246, 8
      %s248 = scalar_lea.vmem %s0, %s247
      %p249 = pneg %p39
      %p250 = pneg %p36
      %p251 = pneg %p60
      %p252 = pneg %p57
      %p253 = pneg %p81
      %p254 = pneg %p78
      %p255 = pneg %p102
      %p256 = pneg %p99
      %p257 = pneg %p123
      %p258 = pneg %p120
      %p259 = pneg %p144
      %p260 = pneg %p141
      %p261 = pneg %p165
      %p262 = pneg %p162
      %p263 = pneg %p191
      %p264 = pneg %p188
      %p265 = scmp.lt.s32.totalorder %s18, 1
      %s266 = scalar_select %p265, %s18, 1
      %s267 = smul.addr %s266, 8
      %s268 = scalar_lea.vmem %s7, %s267
      %s269 = smul.u32 32, %s18
      %p270 = scmp.lt.s32.totalorder %s269, 63
      %s271 = scalar_select %p270, %s269, 63
      %s272 = smul.addr %s271, 8
      %s273 = scalar_lea.vmem %s0, %s272
      %s274 = smul.u32 32, %s18
      %p275 = scmp.lt.s32.totalorder %s18, 1
      %s276 = scalar_select %p275, %s18, 1
      %s277 = smul.addr %s276, 8
      %s278 = scalar_lea.vmem %s7, %s277
      %v279 = vld [vmem:[%s273] sm:$0xff]
      %v280 = vld [vmem:[%s273 + $0x8] sm:$0xff]
      %v281 = vld [vmem:[%s273 + $0x10] sm:$0xff]
      %v282 = vld [vmem:[%s273 + $0x18] sm:$0xff]
      %v283 = vld [vmem:[%s273 + $0x20] sm:$0xff]
      %v284 = vld [vmem:[%s273 + $0x28] sm:$0xff]
      %v285 = vld [vmem:[%s273 + $0x30] sm:$0xff]
      %v286 = vld [vmem:[%s273 + $0x38] sm:$0xff]
      %v287 = vld [vmem:[%s273 + $0x40] sm:$0xff]
      %v288 = vld [vmem:[%s273 + $0x48] sm:$0xff]
      %v289 = vld [vmem:[%s273 + $0x50] sm:$0xff]
      %v290 = vld [vmem:[%s273 + $0x58] sm:$0xff]
      %v291 = vld [vmem:[%s273 + $0x60] sm:$0xff]
      %v292 = vld [vmem:[%s273 + $0x68] sm:$0xff]
      %v293 = vld [vmem:[%s273 + $0x70] sm:$0xff]
      %v294 = vld [vmem:[%s273 + $0x78] sm:$0xff]
      %v295 = vld [vmem:[%s273 + $0x80] sm:$0xff]
      %v296 = vld [vmem:[%s273 + $0x88] sm:$0xff]
      %v297 = vld [vmem:[%s273 + $0x90] sm:$0xff]
      %v298 = vld [vmem:[%s273 + $0x98] sm:$0xff]
      %v299 = vld [vmem:[%s273 + $0xa0] sm:$0xff]
      %v300 = vld [vmem:[%s273 + $0xa8] sm:$0xff]
      %v301 = vld [vmem:[%s273 + $0xb0] sm:$0xff]
      %v302 = vld [vmem:[%s273 + $0xb8] sm:$0xff]
      %v303 = vld [vmem:[%s273 + $0xc0] sm:$0xff]
      %v304 = vld [vmem:[%s273 + $0xc8] sm:$0xff]
      %v305 = vld [vmem:[%s273 + $0xd0] sm:$0xff]
      %v306 = vld [vmem:[%s273 + $0xd8] sm:$0xff]
      %v307 = vld [vmem:[%s273 + $0xe0] sm:$0xff]
      %v308 = vld [vmem:[%s273 + $0xe8] sm:$0xff]
      %v309 = vld [vmem:[%s273 + $0xf0] sm:$0xff]
      %v310 = vld [vmem:[%s273 + $0xf8] sm:$0xff]
      %v311 = vld [vmem:[%s1] sm:$0xff]
      %v312 = vld [vmem:[%s1 + $0x8] sm:$0xff]
      %v313 = vld [vmem:[%s1 + $0x10] sm:$0xff]
      %v314 = vld [vmem:[%s1 + $0x18] sm:$0xff]
      %v315 = vld [vmem:[%s1 + $0x20] sm:$0xff]
      %v316 = vld [vmem:[%s1 + $0x28] sm:$0xff]
      %v317 = vld [vmem:[%s1 + $0x30] sm:$0xff]
      %v318 = vld [vmem:[%s1 + $0x38] sm:$0xff]
      %v319 = vld [vmem:[%s1 + $0x40] sm:$0xff]
      %v320 = vld [vmem:[%s1 + $0x48] sm:$0xff]
      %vm321 = vcmask 654336
      %v323 = vsel %vm321, %v279, 0
      %v326 = vsel %vm321, %v280, 0
      %v329 = vsel %vm321, %v281, 0
      %v332 = vsel %vm321, %v282, 0
      %v335 = vsel %vm321, %v283, 0
      %v338 = vsel %vm321, %v284, 0
      %v341 = vsel %vm321, %v285, 0
      %v344 = vsel %vm321, %v286, 0
      %v347 = vsel %vm321, %v287, 0
      %v350 = vsel %vm321, %v288, 0
      %v353 = vsel %vm321, %v289, 0
      %v356 = vsel %vm321, %v290, 0
      %v359 = vsel %vm321, %v291, 0
      %v362 = vsel %vm321, %v292, 0
      %v365 = vsel %vm321, %v293, 0
      %v368 = vsel %vm321, %v294, 0
      %v371 = vsel %vm321, %v295, 0
      %v374 = vsel %vm321, %v296, 0
      %v377 = vsel %vm321, %v297, 0
      %v380 = vsel %vm321, %v298, 0
      %v383 = vsel %vm321, %v299, 0
      %v386 = vsel %vm321, %v300, 0
      %v389 = vsel %vm321, %v301, 0
      %v392 = vsel %vm321, %v302, 0
      %v395 = vsel %vm321, %v303, 0
      %v398 = vsel %vm321, %v304, 0
      %v401 = vsel %vm321, %v305, 0
      %v404 = vsel %vm321, %v306, 0
      %v407 = vsel %vm321, %v307, 0
      %v410 = vsel %vm321, %v308, 0
      %v413 = vsel %vm321, %v309, 0
      %v416 = vsel %vm321, %v310, 0
      %418 = vmatpush.msra.mxu0 0.0
      %419 = vmatpush.msra.mxu0 0.0
      %420 = vmatpush.msra.mxu0 0.0
      %421 = vmatpush.msra.mxu0 0.0
      %422 = vmatpush.msra.mxu0 0.0
      %423 = vmatpush.msra.mxu0 0.0
      %424 = vmatpush.msra.mxu0 %v320
      %425 = vmatpush.msra.mxu0 %v319
      %426 = vmatpush.msra.mxu0 %v318
      %427 = vmatpush.msra.mxu0 %v317
      %428 = vmatpush.msra.mxu0 %v316
      %429 = vmatpush.msra.mxu0 %v315
      %430 = vmatpush.msra.mxu0 %v314
      %431 = vmatpush.msra.mxu0 %v313
      %432 = vmatpush.msra.mxu0 %v312
      %433 = vmatpush.msra.mxu0 %v311
      %434 = vmatmul.f32.gmra.mxu0 %v323
      %v435 = vpop.f32.mrf.mxu0
      %v436 = vadd.f32 0.0, %v435
      %437 = vmatmul.f32.gmra.mxu0 %v326
      %v438 = vpop.f32.mrf.mxu0
      %v439 = vadd.f32 0.0, %v438
      %440 = vmatmul.f32.gmra.mxu0 %v329
      %v441 = vpop.f32.mrf.mxu0
      %v442 = vadd.f32 0.0, %v441
      %443 = vmatmul.f32.gmra.mxu0 %v332
      %v444 = vpop.f32.mrf.mxu0
      %v445 = vadd.f32 0.0, %v444
      %446 = vmatmul.f32.gmra.mxu0 %v335
      %v447 = vpop.f32.mrf.mxu0
      %v448 = vadd.f32 0.0, %v447
      %449 = vmatmul.f32.gmra.mxu0 %v338
      %v450 = vpop.f32.mrf.mxu0
      %v451 = vadd.f32 0.0, %v450
      %452 = vmatmul.f32.gmra.mxu0 %v341
      %v453 = vpop.f32.mrf.mxu0
      %v454 = vadd.f32 0.0, %v453
      %455 = vmatmul.f32.gmra.mxu0 %v344
      %v456 = vpop.f32.mrf.mxu0
      %v457 = vadd.f32 0.0, %v456
      %458 = vmatmul.f32.gmra.mxu0 %v347
      %v459 = vpop.f32.mrf.mxu0
      %v460 = vadd.f32 0.0, %v459
      %461 = vmatmul.f32.gmra.mxu0 %v350
      %v462 = vpop.f32.mrf.mxu0
      %v463 = vadd.f32 0.0, %v462
      %464 = vmatmul.f32.gmra.mxu0 %v353
      %v465 = vpop.f32.mrf.mxu0
      %v466 = vadd.f32 0.0, %v465
      %467 = vmatmul.f32.gmra.mxu0 %v356
      %v468 = vpop.f32.mrf.mxu0
      %v469 = vadd.f32 0.0, %v468
      %470 = vmatmul.f32.gmra.mxu0 %v359
      %v471 = vpop.f32.mrf.mxu0
      %v472 = vadd.f32 0.0, %v471
      %473 = vmatmul.f32.gmra.mxu0 %v362
      %v474 = vpop.f32.mrf.mxu0
      %v475 = vadd.f32 0.0, %v474
      %476 = vmatmul.f32.gmra.mxu0 %v365
      %v477 = vpop.f32.mrf.mxu0
      %v478 = vadd.f32 0.0, %v477
      %479 = vmatmul.f32.gmra.mxu0 %v368
      %v480 = vpop.f32.mrf.mxu0
      %v481 = vadd.f32 0.0, %v480
      %482 = vmatmul.f32.gmra.mxu0 %v371
      %v483 = vpop.f32.mrf.mxu0
      %v484 = vadd.f32 0.0, %v483
      %485 = vmatmul.f32.gmra.mxu0 %v374
      %v486 = vpop.f32.mrf.mxu0
      %v487 = vadd.f32 0.0, %v486
      %488 = vmatmul.f32.gmra.mxu0 %v377
      %v489 = vpop.f32.mrf.mxu0
      %v490 = vadd.f32 0.0, %v489
      %491 = vmatmul.f32.gmra.mxu0 %v380
      %v492 = vpop.f32.mrf.mxu0
      %v493 = vadd.f32 0.0, %v492
      %494 = vmatmul.f32.gmra.mxu0 %v383
      %v495 = vpop.f32.mrf.mxu0
      %v496 = vadd.f32 0.0, %v495
      %497 = vmatmul.f32.gmra.mxu0 %v386
      %v498 = vpop.f32.mrf.mxu0
      %v499 = vadd.f32 0.0, %v498
      %500 = vmatmul.f32.gmra.mxu0 %v389
      %v501 = vpop.f32.mrf.mxu0
      %v502 = vadd.f32 0.0, %v501
      %503 = vmatmul.f32.gmra.mxu0 %v392
      %v504 = vpop.f32.mrf.mxu0
      %v505 = vadd.f32 0.0, %v504
      %506 = vmatmul.f32.gmra.mxu0 %v395
      %v507 = vpop.f32.mrf.mxu0
      %v508 = vadd.f32 0.0, %v507
      %509 = vmatmul.f32.gmra.mxu0 %v398
      %v510 = vpop.f32.mrf.mxu0
      %v511 = vadd.f32 0.0, %v510
      %512 = vmatmul.f32.gmra.mxu0 %v401
      %v513 = vpop.f32.mrf.mxu0
      %v514 = vadd.f32 0.0, %v513
      %515 = vmatmul.f32.gmra.mxu0 %v404
      %v516 = vpop.f32.mrf.mxu0
      %v517 = vadd.f32 0.0, %v516
      %518 = vmatmul.f32.gmra.mxu0 %v407
      %v519 = vpop.f32.mrf.mxu0
      %v520 = vadd.f32 0.0, %v519
      %521 = vmatmul.f32.gmra.mxu0 %v410
      %v522 = vpop.f32.mrf.mxu0
      %v523 = vadd.f32 0.0, %v522
      %524 = vmatmul.f32.gmra.mxu0 %v413
      %v525 = vpop.f32.mrf.mxu0
      %v526 = vadd.f32 0.0, %v525
      %527 = vmatmul.f32.gmra.mxu0 %v416
      %v528 = vpop.f32.mrf.mxu0
      %v529 = vadd.f32 0.0, %v528
      %530 = vdwg.mxu0
      %531 = vrot.lane.b32.xlu0 %v436, 64
      %v532 = vpop.permute.xlu0 %531
      %533 = vrot.lane.b32.xlu0 %v439, 64
      %v534 = vpop.permute.xlu0 %533
      %535 = vrot.lane.b32.xlu0 %v442, 64
      %v536 = vpop.permute.xlu0 %535
      %537 = vrot.lane.b32.xlu0 %v445, 64
      %v538 = vpop.permute.xlu0 %537
      %539 = vrot.lane.b32.xlu0 %v448, 64
      %v540 = vpop.permute.xlu0 %539
      %541 = vrot.lane.b32.xlu0 %v451, 64
      %v542 = vpop.permute.xlu0 %541
      %543 = vrot.lane.b32.xlu0 %v454, 64
      %v544 = vpop.permute.xlu0 %543
      %545 = vrot.lane.b32.xlu0 %v457, 64
      %v546 = vpop.permute.xlu0 %545
      %547 = vrot.lane.b32.xlu0 %v460, 64
      %v548 = vpop.permute.xlu0 %547
      %549 = vrot.lane.b32.xlu0 %v463, 64
      %v550 = vpop.permute.xlu0 %549
      %551 = vrot.lane.b32.xlu0 %v466, 64
      %v552 = vpop.permute.xlu0 %551
      %553 = vrot.lane.b32.xlu0 %v469, 64
      %v554 = vpop.permute.xlu0 %553
      %555 = vrot.lane.b32.xlu0 %v472, 64
      %v556 = vpop.permute.xlu0 %555
      %557 = vrot.lane.b32.xlu0 %v475, 64
      %v558 = vpop.permute.xlu0 %557
      %559 = vrot.lane.b32.xlu0 %v478, 64
      %v560 = vpop.permute.xlu0 %559
      %561 = vrot.lane.b32.xlu0 %v481, 64
      %v562 = vpop.permute.xlu0 %561
      %563 = vrot.lane.b32.xlu0 %v484, 64
      %v564 = vpop.permute.xlu0 %563
      %565 = vrot.lane.b32.xlu0 %v487, 64
      %v566 = vpop.permute.xlu0 %565
      %567 = vrot.lane.b32.xlu0 %v490, 64
      %v568 = vpop.permute.xlu0 %567
      %569 = vrot.lane.b32.xlu0 %v493, 64
      %v570 = vpop.permute.xlu0 %569
      %571 = vrot.lane.b32.xlu0 %v496, 64
      %v572 = vpop.permute.xlu0 %571
      %573 = vrot.lane.b32.xlu0 %v499, 64
      %v574 = vpop.permute.xlu0 %573
      %575 = vrot.lane.b32.xlu0 %v502, 64
      %v576 = vpop.permute.xlu0 %575
      %577 = vrot.lane.b32.xlu0 %v505, 64
      %v578 = vpop.permute.xlu0 %577
      %579 = vrot.lane.b32.xlu0 %v508, 64
      %v580 = vpop.permute.xlu0 %579
      %581 = vrot.lane.b32.xlu0 %v511, 64
      %v582 = vpop.permute.xlu0 %581
      %583 = vrot.lane.b32.xlu0 %v514, 64
      %v584 = vpop.permute.xlu0 %583
      %585 = vrot.lane.b32.xlu0 %v517, 64
      %v586 = vpop.permute.xlu0 %585
      %587 = vrot.lane.b32.xlu0 %v520, 64
      %v588 = vpop.permute.xlu0 %587
      %589 = vrot.lane.b32.xlu0 %v523, 64
      %v590 = vpop.permute.xlu0 %589
      %591 = vrot.lane.b32.xlu0 %v526, 64
      %v592 = vpop.permute.xlu0 %591
      %593 = vrot.lane.b32.xlu0 %v529, 64
      %v594 = vpop.permute.xlu0 %593
      %v595 = vmax.f32 %v436, %v532
      %v596 = vmax.f32 %v439, %v534
      %v597 = vmax.f32 %v442, %v536
      %v598 = vmax.f32 %v445, %v538
      %v599 = vmax.f32 %v448, %v540
      %v600 = vmax.f32 %v451, %v542
      %v601 = vmax.f32 %v454, %v544
      %v602 = vmax.f32 %v457, %v546
      %v603 = vmax.f32 %v460, %v548
      %v604 = vmax.f32 %v463, %v550
      %v605 = vmax.f32 %v466, %v552
      %v606 = vmax.f32 %v469, %v554
      %v607 = vmax.f32 %v472, %v556
      %v608 = vmax.f32 %v475, %v558
      %v609 = vmax.f32 %v478, %v560
      %v610 = vmax.f32 %v481, %v562
      %v611 = vmax.f32 %v484, %v564
      %v612 = vmax.f32 %v487, %v566
      %v613 = vmax.f32 %v490, %v568
      %v614 = vmax.f32 %v493, %v570
      %v615 = vmax.f32 %v496, %v572
      %v616 = vmax.f32 %v499, %v574
      %v617 = vmax.f32 %v502, %v576
      %v618 = vmax.f32 %v505, %v578
      %v619 = vmax.f32 %v508, %v580
      %v620 = vmax.f32 %v511, %v582
      %v621 = vmax.f32 %v514, %v584
      %v622 = vmax.f32 %v517, %v586
      %v623 = vmax.f32 %v520, %v588
      %v624 = vmax.f32 %v523, %v590
      %v625 = vmax.f32 %v526, %v592
      %v626 = vmax.f32 %v529, %v594
      %v627 = vlaneseq
      %v628 = vshrl.u32 %v627, 7
      %v629 = vadd.s32 %v628, 8
      %v630 = vadd.s32 %v628, 16
      %v631 = vadd.s32 %v628, 24
      %v632 = vadd.s32 %v628, 32
      %v633 = vadd.s32 %v628, 40
      %v634 = vadd.s32 %v628, 48
      %v635 = vadd.s32 %v628, 56
      %v636 = vadd.s32 %v628, 64
      %v637 = vadd.s32 %v628, 72
      %v638 = vadd.s32 %v628, 80
      %v639 = vadd.s32 %v628, 88
      %v640 = vadd.s32 %v628, 96
      %v641 = vadd.s32 %v628, 104
      %v642 = vadd.s32 %v628, 112
      %v643 = vadd.s32 %v628, 120
      %v644 = vadd.s32 %v628, 128
      %v645 = vadd.s32 %v628, 136
      %v646 = vadd.s32 %v628, 144
      %v647 = vadd.s32 %v628, 152
      %v648 = vadd.s32 %v628, 160
      %v649 = vadd.s32 %v628, 168
      %v650 = vadd.s32 %v628, 176
      %v651 = vadd.s32 %v628, 184
      %v652 = vadd.s32 %v628, 192
      %v653 = vadd.s32 %v628, 200
      %v654 = vadd.s32 %v628, 208
      %v655 = vadd.s32 %v628, 216
      %v656 = vadd.s32 %v628, 224
      %v657 = vadd.s32 %v628, 232
      %v658 = vadd.s32 %v628, 240
      %v659 = vadd.s32 %v628, 248
      %v660 = vand.u32 %v628, 31
      %v661 = vand.u32 %v629, 31
      %v662 = vand.u32 %v630, 31
      %v663 = vand.u32 %v631, 31
      %v664 = vand.u32 %v632, 31
      %v665 = vand.u32 %v633, 31
      %v666 = vand.u32 %v634, 31
      %v667 = vand.u32 %v635, 31
      %v668 = vand.u32 %v636, 31
      %v669 = vand.u32 %v637, 31
      %v670 = vand.u32 %v638, 31
      %v671 = vand.u32 %v639, 31
      %v672 = vand.u32 %v640, 31
      %v673 = vand.u32 %v641, 31
      %v674 = vand.u32 %v642, 31
      %v675 = vand.u32 %v643, 31
      %v676 = vand.u32 %v644, 31
      %v677 = vand.u32 %v645, 31
      %v678 = vand.u32 %v646, 31
      %v679 = vand.u32 %v647, 31
      %v680 = vand.u32 %v648, 31
      %v681 = vand.u32 %v649, 31
      %v682 = vand.u32 %v650, 31
      %v683 = vand.u32 %v651, 31
      %v684 = vand.u32 %v652, 31
      %v685 = vand.u32 %v653, 31
      %v686 = vand.u32 %v654, 31
      %v687 = vand.u32 %v655, 31
      %v688 = vand.u32 %v656, 31
      %v689 = vand.u32 %v657, 31
      %v690 = vand.u32 %v658, 31
      %v691 = vand.u32 %v659, 31
      %vm692 = vcmp.lt.s32.totalorder %v660, 25
      %vm693 = vcmp.lt.s32.totalorder %v661, 25
      %vm694 = vcmp.lt.s32.totalorder %v662, 25
      %vm695 = vcmp.lt.s32.totalorder %v663, 25
      %vm696 = vcmp.lt.s32.totalorder %v664, 25
      %vm697 = vcmp.lt.s32.totalorder %v665, 25
      %vm698 = vcmp.lt.s32.totalorder %v666, 25
      %vm699 = vcmp.lt.s32.totalorder %v667, 25
      %vm700 = vcmp.lt.s32.totalorder %v668, 25
      %vm701 = vcmp.lt.s32.totalorder %v669, 25
      %vm702 = vcmp.lt.s32.totalorder %v670, 25
      %vm703 = vcmp.lt.s32.totalorder %v671, 25
      %vm704 = vcmp.lt.s32.totalorder %v672, 25
      %vm705 = vcmp.lt.s32.totalorder %v673, 25
      %vm706 = vcmp.lt.s32.totalorder %v674, 25
      %vm707 = vcmp.lt.s32.totalorder %v675, 25
      %vm708 = vcmp.lt.s32.totalorder %v676, 25
      %vm709 = vcmp.lt.s32.totalorder %v677, 25
      %vm710 = vcmp.lt.s32.totalorder %v678, 25
      %vm711 = vcmp.lt.s32.totalorder %v679, 25
      %vm712 = vcmp.lt.s32.totalorder %v680, 25
      %vm713 = vcmp.lt.s32.totalorder %v681, 25
      %vm714 = vcmp.lt.s32.totalorder %v682, 25
      %vm715 = vcmp.lt.s32.totalorder %v683, 25
      %vm716 = vcmp.lt.s32.totalorder %v684, 25
      %vm717 = vcmp.lt.s32.totalorder %v685, 25
      %vm718 = vcmp.lt.s32.totalorder %v686, 25
      %vm719 = vcmp.lt.s32.totalorder %v687, 25
      %vm720 = vcmp.lt.s32.totalorder %v688, 25
      %vm721 = vcmp.lt.s32.totalorder %v689, 25
      %vm722 = vcmp.lt.s32.totalorder %v690, 25
      %vm723 = vcmp.lt.s32.totalorder %v691, 25
      %v724 = vld [vmem:[%s2] sm:$0x1]
      %v726 = vperm.slane %v724, 0
      %v728 = vadd.f32 %v595, %v726
      %v729 = vadd.f32 %v596, %v726
      %v730 = vadd.f32 %v597, %v726
      %v731 = vadd.f32 %v598, %v726
      %v732 = vadd.f32 %v599, %v726
      %v733 = vadd.f32 %v600, %v726
      %v734 = vadd.f32 %v601, %v726
      %v735 = vadd.f32 %v602, %v726
      %v736 = vadd.f32 %v603, %v726
      %v737 = vadd.f32 %v604, %v726
      %v738 = vadd.f32 %v605, %v726
      %v739 = vadd.f32 %v606, %v726
      %v740 = vadd.f32 %v607, %v726
      %v741 = vadd.f32 %v608, %v726
      %v742 = vadd.f32 %v609, %v726
      %v743 = vadd.f32 %v610, %v726
      %v744 = vadd.f32 %v611, %v726
      %v745 = vadd.f32 %v612, %v726
      %v746 = vadd.f32 %v613, %v726
      %v747 = vadd.f32 %v614, %v726
      %v748 = vadd.f32 %v615, %v726
      %v749 = vadd.f32 %v616, %v726
      %v750 = vadd.f32 %v617, %v726
      %v751 = vadd.f32 %v618, %v726
      %v752 = vadd.f32 %v619, %v726
      %v753 = vadd.f32 %v620, %v726
      %v754 = vadd.f32 %v621, %v726
      %v755 = vadd.f32 %v622, %v726
      %v756 = vadd.f32 %v623, %v726
      %v757 = vadd.f32 %v624, %v726
      %v758 = vadd.f32 %v625, %v726
      %v759 = vadd.f32 %v626, %v726
      %v760 = vmax.f32 %v728, 0.0
      %v761 = vmax.f32 %v729, 0.0
      %v762 = vmax.f32 %v730, 0.0
      %v763 = vmax.f32 %v731, 0.0
      %v764 = vmax.f32 %v732, 0.0
      %v765 = vmax.f32 %v733, 0.0
      %v766 = vmax.f32 %v734, 0.0
      %v767 = vmax.f32 %v735, 0.0
      %v768 = vmax.f32 %v736, 0.0
      %v769 = vmax.f32 %v737, 0.0
      %v770 = vmax.f32 %v738, 0.0
      %v771 = vmax.f32 %v739, 0.0
      %v772 = vmax.f32 %v740, 0.0
      %v773 = vmax.f32 %v741, 0.0
      %v774 = vmax.f32 %v742, 0.0
      %v775 = vmax.f32 %v743, 0.0
      %v776 = vmax.f32 %v744, 0.0
      %v777 = vmax.f32 %v745, 0.0
      %v778 = vmax.f32 %v746, 0.0
      %v779 = vmax.f32 %v747, 0.0
      %v780 = vmax.f32 %v748, 0.0
      %v781 = vmax.f32 %v749, 0.0
      %v782 = vmax.f32 %v750, 0.0
      %v783 = vmax.f32 %v751, 0.0
      %v784 = vmax.f32 %v752, 0.0
      %v785 = vmax.f32 %v753, 0.0
      %v786 = vmax.f32 %v754, 0.0
      %v787 = vmax.f32 %v755, 0.0
      %v788 = vmax.f32 %v756, 0.0
      %v789 = vmax.f32 %v757, 0.0
      %v790 = vmax.f32 %v758, 0.0
      %v791 = vmax.f32 %v759, 0.0
      %v792 = vsel %vm692, %v760, 0.0
      %v793 = vsel %vm693, %v761, 0.0
      %v794 = vsel %vm694, %v762, 0.0
      %v795 = vsel %vm695, %v763, 0.0
      %v796 = vsel %vm696, %v764, 0.0
      %v797 = vsel %vm697, %v765, 0.0
      %v798 = vsel %vm698, %v766, 0.0
      %v799 = vsel %vm699, %v767, 0.0
      %v800 = vsel %vm700, %v768, 0.0
      %v801 = vsel %vm701, %v769, 0.0
      %v802 = vsel %vm702, %v770, 0.0
      %v803 = vsel %vm703, %v771, 0.0
      %v804 = vsel %vm704, %v772, 0.0
      %v805 = vsel %vm705, %v773, 0.0
      %v806 = vsel %vm706, %v774, 0.0
      %v807 = vsel %vm707, %v775, 0.0
      %v808 = vsel %vm708, %v776, 0.0
      %v809 = vsel %vm709, %v777, 0.0
      %v810 = vsel %vm710, %v778, 0.0
      %v811 = vsel %vm711, %v779, 0.0
      %v812 = vsel %vm712, %v780, 0.0
      %v813 = vsel %vm713, %v781, 0.0
      %v814 = vsel %vm714, %v782, 0.0
      %v815 = vsel %vm715, %v783, 0.0
      %v816 = vsel %vm716, %v784, 0.0
      %v817 = vsel %vm717, %v785, 0.0
      %v818 = vsel %vm718, %v786, 0.0
      %v819 = vsel %vm719, %v787, 0.0
      %v820 = vsel %vm720, %v788, 0.0
      %v821 = vsel %vm721, %v789, 0.0
      %v822 = vsel %vm722, %v790, 0.0
      %v823 = vsel %vm723, %v791, 0.0
      %824 = vrot.lane.b32.xlu0 %v792, 32
      %v825 = vpop.permute.xlu0 %824
      %826 = vrot.lane.b32.xlu0 %v793, 32
      %v827 = vpop.permute.xlu0 %826
      %828 = vrot.lane.b32.xlu0 %v794, 32
      %v829 = vpop.permute.xlu0 %828
      %830 = vrot.lane.b32.xlu0 %v795, 32
      %v831 = vpop.permute.xlu0 %830
      %832 = vrot.lane.b32.xlu0 %v796, 32
      %v833 = vpop.permute.xlu0 %832
      %834 = vrot.lane.b32.xlu0 %v797, 32
      %v835 = vpop.permute.xlu0 %834
      %836 = vrot.lane.b32.xlu0 %v798, 32
      %v837 = vpop.permute.xlu0 %836
      %838 = vrot.lane.b32.xlu0 %v799, 32
      %v839 = vpop.permute.xlu0 %838
      %840 = vrot.lane.b32.xlu0 %v800, 32
      %v841 = vpop.permute.xlu0 %840
      %842 = vrot.lane.b32.xlu0 %v801, 32
      %v843 = vpop.permute.xlu0 %842
      %844 = vrot.lane.b32.xlu0 %v802, 32
      %v845 = vpop.permute.xlu0 %844
      %846 = vrot.lane.b32.xlu0 %v803, 32
      %v847 = vpop.permute.xlu0 %846
      %848 = vrot.lane.b32.xlu0 %v804, 32
      %v849 = vpop.permute.xlu0 %848
      %850 = vrot.lane.b32.xlu0 %v805, 32
      %v851 = vpop.permute.xlu0 %850
      %852 = vrot.lane.b32.xlu0 %v806, 32
      %v853 = vpop.permute.xlu0 %852
      %854 = vrot.lane.b32.xlu0 %v807, 32
      %v855 = vpop.permute.xlu0 %854
      %856 = vrot.lane.b32.xlu0 %v808, 32
      %v857 = vpop.permute.xlu0 %856
      %858 = vrot.lane.b32.xlu0 %v809, 32
      %v859 = vpop.permute.xlu0 %858
      %860 = vrot.lane.b32.xlu0 %v810, 32
      %v861 = vpop.permute.xlu0 %860
      %862 = vrot.lane.b32.xlu0 %v811, 32
      %v863 = vpop.permute.xlu0 %862
      %864 = vrot.lane.b32.xlu0 %v812, 32
      %v865 = vpop.permute.xlu0 %864
      %866 = vrot.lane.b32.xlu0 %v813, 32
      %v867 = vpop.permute.xlu0 %866
      %868 = vrot.lane.b32.xlu0 %v814, 32
      %v869 = vpop.permute.xlu0 %868
      %870 = vrot.lane.b32.xlu0 %v815, 32
      %v871 = vpop.permute.xlu0 %870
      %872 = vrot.lane.b32.xlu0 %v816, 32
      %v873 = vpop.permute.xlu0 %872
      %874 = vrot.lane.b32.xlu0 %v817, 32
      %v875 = vpop.permute.xlu0 %874
      %876 = vrot.lane.b32.xlu0 %v818, 32
      %v877 = vpop.permute.xlu0 %876
      %878 = vrot.lane.b32.xlu0 %v819, 32
      %v879 = vpop.permute.xlu0 %878
      %880 = vrot.lane.b32.xlu0 %v820, 32
      %v881 = vpop.permute.xlu0 %880
      %882 = vrot.lane.b32.xlu0 %v821, 32
      %v883 = vpop.permute.xlu0 %882
      %884 = vrot.lane.b32.xlu0 %v822, 32
      %v885 = vpop.permute.xlu0 %884
      %886 = vrot.lane.b32.xlu0 %v823, 32
      %v887 = vpop.permute.xlu0 %886
      %v888 = vrot.slane %v825, 7
      %v889 = vrot.slane %v827, 7
      %v890 = vrot.slane %v829, 7
      %v891 = vrot.slane %v831, 7
      %v892 = vrot.slane %v833, 7
      %v893 = vrot.slane %v835, 7
      %v894 = vrot.slane %v837, 7
      %v895 = vrot.slane %v839, 7
      %v896 = vrot.slane %v841, 7
      %v897 = vrot.slane %v843, 7
      %v898 = vrot.slane %v845, 7
      %v899 = vrot.slane %v847, 7
      %v900 = vrot.slane %v849, 7
      %v901 = vrot.slane %v851, 7
      %v902 = vrot.slane %v853, 7
      %v903 = vrot.slane %v855, 7
      %v904 = vrot.slane %v857, 7
      %v905 = vrot.slane %v859, 7
      %v906 = vrot.slane %v861, 7
      %v907 = vrot.slane %v863, 7
      %v908 = vrot.slane %v865, 7
      %v909 = vrot.slane %v867, 7
      %v910 = vrot.slane %v869, 7
      %v911 = vrot.slane %v871, 7
      %v912 = vrot.slane %v873, 7
      %v913 = vrot.slane %v875, 7
      %v914 = vrot.slane %v877, 7
      %v915 = vrot.slane %v879, 7
      %v916 = vrot.slane %v881, 7
      %v917 = vrot.slane %v883, 7
      %v918 = vrot.slane %v885, 7
      %v919 = vrot.slane %v887, 7
      %vm920 = vcmp.lt.s32.totalorder %v628, 1
      %v921 = vsel %vm920, %v918, %v919
      %v922 = vsel %vm920, %v917, %v918
      %v923 = vsel %vm920, %v916, %v917
      %v924 = vsel %vm920, %v915, %v916
      %v925 = vsel %vm920, %v914, %v915
      %v926 = vsel %vm920, %v913, %v914
      %v927 = vsel %vm920, %v912, %v913
      %v928 = vsel %vm920, %v911, %v912
      %v929 = vsel %vm920, %v910, %v911
      %v930 = vsel %vm920, %v909, %v910
      %v931 = vsel %vm920, %v908, %v909
      %v932 = vsel %vm920, %v907, %v908
      %v933 = vsel %vm920, %v906, %v907
      %v934 = vsel %vm920, %v905, %v906
      %v935 = vsel %vm920, %v904, %v905
      %v936 = vsel %vm920, %v903, %v904
      %v937 = vsel %vm920, %v902, %v903
      %v938 = vsel %vm920, %v901, %v902
      %v939 = vsel %vm920, %v900, %v901
      %v940 = vsel %vm920, %v899, %v900
      %v941 = vsel %vm920, %v898, %v899
      %v942 = vsel %vm920, %v897, %v898
      %v943 = vsel %vm920, %v896, %v897
      %v944 = vsel %vm920, %v895, %v896
      %v945 = vsel %vm920, %v894, %v895
      %v946 = vsel %vm920, %v893, %v894
      %v947 = vsel %vm920, %v892, %v893
      %v948 = vsel %vm920, %v891, %v892
      %v949 = vsel %vm920, %v890, %v891
      %v950 = vsel %vm920, %v889, %v890
      %v951 = vsel %vm920, %v888, %v889
      %v952 = vsel %vm920, %v919, %v888
      %v953 = vrot.slane %v825, 1
      %v954 = vrot.slane %v827, 1
      %v955 = vrot.slane %v829, 1
      %v956 = vrot.slane %v831, 1
      %v957 = vrot.slane %v833, 1
      %v958 = vrot.slane %v835, 1
      %v959 = vrot.slane %v837, 1
      %v960 = vrot.slane %v839, 1
      %v961 = vrot.slane %v841, 1
      %v962 = vrot.slane %v843, 1
      %v963 = vrot.slane %v845, 1
      %v964 = vrot.slane %v847, 1
      %v965 = vrot.slane %v849, 1
      %v966 = vrot.slane %v851, 1
      %v967 = vrot.slane %v853, 1
      %v968 = vrot.slane %v855, 1
      %v969 = vrot.slane %v857, 1
      %v970 = vrot.slane %v859, 1
      %v971 = vrot.slane %v861, 1
      %v972 = vrot.slane %v863, 1
      %v973 = vrot.slane %v865, 1
      %v974 = vrot.slane %v867, 1
      %v975 = vrot.slane %v869, 1
      %v976 = vrot.slane %v871, 1
      %v977 = vrot.slane %v873, 1
      %v978 = vrot.slane %v875, 1
      %v979 = vrot.slane %v877, 1
      %v980 = vrot.slane %v879, 1
      %v981 = vrot.slane %v881, 1
      %v982 = vrot.slane %v883, 1
      %v983 = vrot.slane %v885, 1
      %v984 = vrot.slane %v887, 1
      %vm985 = vcmp.lt.s32.totalorder %v628, 7
      %v986 = vsel %vm985, %v983, %v984
      %v987 = vsel %vm985, %v982, %v983
      %v988 = vsel %vm985, %v981, %v982
      %v989 = vsel %vm985, %v980, %v981
      %v990 = vsel %vm985, %v979, %v980
      %v991 = vsel %vm985, %v978, %v979
      %v992 = vsel %vm985, %v977, %v978
      %v993 = vsel %vm985, %v976, %v977
      %v994 = vsel %vm985, %v975, %v976
      %v995 = vsel %vm985, %v974, %v975
      %v996 = vsel %vm985, %v973, %v974
      %v997 = vsel %vm985, %v972, %v973
      %v998 = vsel %vm985, %v971, %v972
      %v999 = vsel %vm985, %v970, %v971
      %v1000 = vsel %vm985, %v969, %v970
      %v1001 = vsel %vm985, %v968, %v969
      %v1002 = vsel %vm985, %v967, %v968
      %v1003 = vsel %vm985, %v966, %v967
      %v1004 = vsel %vm985, %v965, %v966
      %v1005 = vsel %vm985, %v964, %v965
      %v1006 = vsel %vm985, %v963, %v964
      %v1007 = vsel %vm985, %v962, %v963
      %v1008 = vsel %vm985, %v961, %v962
      %v1009 = vsel %vm985, %v960, %v961
      %v1010 = vsel %vm985, %v959, %v960
      %v1011 = vsel %vm985, %v958, %v959
      %v1012 = vsel %vm985, %v957, %v958
      %v1013 = vsel %vm985, %v956, %v957
      %v1014 = vsel %vm985, %v955, %v956
      %v1015 = vsel %vm985, %v954, %v955
      %v1016 = vsel %vm985, %v953, %v954
      %v1017 = vsel %vm985, %v984, %v953
      %v1018 = vlaneseq
      %v1019 = vand.u32 %v1018, 127
      %vm1020 = vcmp.lt.s32.totalorder %v1019, 32
      %vm1021 = vcmp.lt.s32.totalorder %v1019, 96
      %v1022 = vsel %vm1021, %v825, %v1016
      %v1023 = vsel %vm1021, %v827, %v1015
      %v1024 = vsel %vm1021, %v829, %v1014
      %v1025 = vsel %vm1021, %v831, %v1013
      %v1026 = vsel %vm1021, %v833, %v1012
      %v1027 = vsel %vm1021, %v835, %v1011
      %v1028 = vsel %vm1021, %v837, %v1010
      %v1029 = vsel %vm1021, %v839, %v1009
      %v1030 = vsel %vm1021, %v841, %v1008
      %v1031 = vsel %vm1021, %v843, %v1007
      %v1032 = vsel %vm1021, %v845, %v1006
      %v1033 = vsel %vm1021, %v847, %v1005
      %v1034 = vsel %vm1021, %v849, %v1004
      %v1035 = vsel %vm1021, %v851, %v1003
      %v1036 = vsel %vm1021, %v853, %v1002
      %v1037 = vsel %vm1021, %v855, %v1001
      %v1038 = vsel %vm1021, %v857, %v1000
      %v1039 = vsel %vm1021, %v859, %v999
      %v1040 = vsel %vm1021, %v861, %v998
      %v1041 = vsel %vm1021, %v863, %v997
      %v1042 = vsel %vm1021, %v865, %v996
      %v1043 = vsel %vm1021, %v867, %v995
      %v1044 = vsel %vm1021, %v869, %v994
      %v1045 = vsel %vm1021, %v871, %v993
      %v1046 = vsel %vm1021, %v873, %v992
      %v1047 = vsel %vm1021, %v875, %v991
      %v1048 = vsel %vm1021, %v877, %v990
      %v1049 = vsel %vm1021, %v879, %v989
      %v1050 = vsel %vm1021, %v881, %v988
      %v1051 = vsel %vm1021, %v883, %v987
      %v1052 = vsel %vm1021, %v885, %v986
      %v1053 = vsel %vm1021, %v887, %v1017
      %v1054 = vsel %vm1020, %v952, %v1022
      %v1055 = vsel %vm1020, %v951, %v1023
      %v1056 = vsel %vm1020, %v950, %v1024
      %v1057 = vsel %vm1020, %v949, %v1025
      %v1058 = vsel %vm1020, %v948, %v1026
      %v1059 = vsel %vm1020, %v947, %v1027
      %v1060 = vsel %vm1020, %v946, %v1028
      %v1061 = vsel %vm1020, %v945, %v1029
      %v1062 = vsel %vm1020, %v944, %v1030
      %v1063 = vsel %vm1020, %v943, %v1031
      %v1064 = vsel %vm1020, %v942, %v1032
      %v1065 = vsel %vm1020, %v941, %v1033
      %v1066 = vsel %vm1020, %v940, %v1034
      %v1067 = vsel %vm1020, %v939, %v1035
      %v1068 = vsel %vm1020, %v938, %v1036
      %v1069 = vsel %vm1020, %v937, %v1037
      %v1070 = vsel %vm1020, %v936, %v1038
      %v1071 = vsel %vm1020, %v935, %v1039
      %v1072 = vsel %vm1020, %v934, %v1040
      %v1073 = vsel %vm1020, %v933, %v1041
      %v1074 = vsel %vm1020, %v932, %v1042
      %v1075 = vsel %vm1020, %v931, %v1043
      %v1076 = vsel %vm1020, %v930, %v1044
      %v1077 = vsel %vm1020, %v929, %v1045
      %v1078 = vsel %vm1020, %v928, %v1046
      %v1079 = vsel %vm1020, %v927, %v1047
      %v1080 = vsel %vm1020, %v926, %v1048
      %v1081 = vsel %vm1020, %v925, %v1049
      %v1082 = vsel %vm1020, %v924, %v1050
      %v1083 = vsel %vm1020, %v923, %v1051
      %v1084 = vsel %vm1020, %v922, %v1052
      %v1085 = vsel %vm1020, %v921, %v1053
      %v1086 = vld [vmem:[%s3] sm:$0xff]
      %v1087 = vld [vmem:[%s3 + $0x8] sm:$0xff]
      %v1088 = vld [vmem:[%s3 + $0x10] sm:$0xff]
      %v1089 = vld [vmem:[%s3 + $0x18] sm:$0xff]
      %v1090 = vld [vmem:[%s3 + $0x20] sm:$0xff]
      %v1091 = vld [vmem:[%s3 + $0x28] sm:$0xff]
      %v1092 = vld [vmem:[%s3 + $0x30] sm:$0xff]
      %v1093 = vld [vmem:[%s3 + $0x38] sm:$0xff]
      %v1094 = vld [vmem:[%s3 + $0x40] sm:$0xff]
      %v1095 = vld [vmem:[%s3 + $0x48] sm:$0xff]
      %v1096 = vld [vmem:[%s3 + $0x50] sm:$0xff]
      %v1097 = vld [vmem:[%s3 + $0x58] sm:$0xff]
      %v1098 = vld [vmem:[%s3 + $0x60] sm:$0xff]
      %v1099 = vld [vmem:[%s3 + $0x68] sm:$0xff]
      %v1100 = vld [vmem:[%s3 + $0x70] sm:$0xff]
      %v1101 = vld [vmem:[%s3 + $0x78] sm:$0xff]
      %1102 = vmatpush.msra.mxu0 %v1101
      %1103 = vmatpush.msra.mxu0 %v1100
      %1104 = vmatpush.msra.mxu0 %v1099
      %1105 = vmatpush.msra.mxu0 %v1098
      %1106 = vmatpush.msra.mxu0 %v1097
      %1107 = vmatpush.msra.mxu0 %v1096
      %1108 = vmatpush.msra.mxu0 %v1095
      %1109 = vmatpush.msra.mxu0 %v1094
      %1110 = vmatpush.msra.mxu0 %v1093
      %1111 = vmatpush.msra.mxu0 %v1092
      %1112 = vmatpush.msra.mxu0 %v1091
      %1113 = vmatpush.msra.mxu0 %v1090
      %1114 = vmatpush.msra.mxu0 %v1089
      %1115 = vmatpush.msra.mxu0 %v1088
      %1116 = vmatpush.msra.mxu0 %v1087
      %1117 = vmatpush.msra.mxu0 %v1086
      %1118 = vmatmul.f32.gmra.mxu0 %v1054
      %v1119 = vpop.f32.mrf.mxu0
      %v1120 = vadd.f32 0.0, %v1119
      %1121 = vmatmul.f32.gmra.mxu0 %v1055
      %v1122 = vpop.f32.mrf.mxu0
      %v1123 = vadd.f32 0.0, %v1122
      %1124 = vmatmul.f32.gmra.mxu0 %v1056
      %v1125 = vpop.f32.mrf.mxu0
      %v1126 = vadd.f32 0.0, %v1125
      %1127 = vmatmul.f32.gmra.mxu0 %v1057
      %v1128 = vpop.f32.mrf.mxu0
      %v1129 = vadd.f32 0.0, %v1128
      %1130 = vmatmul.f32.gmra.mxu0 %v1058
      %v1131 = vpop.f32.mrf.mxu0
      %v1132 = vadd.f32 0.0, %v1131
      %1133 = vmatmul.f32.gmra.mxu0 %v1059
      %v1134 = vpop.f32.mrf.mxu0
      %v1135 = vadd.f32 0.0, %v1134
      %1136 = vmatmul.f32.gmra.mxu0 %v1060
      %v1137 = vpop.f32.mrf.mxu0
      %v1138 = vadd.f32 0.0, %v1137
      %1139 = vmatmul.f32.gmra.mxu0 %v1061
      %v1140 = vpop.f32.mrf.mxu0
      %v1141 = vadd.f32 0.0, %v1140
      %1142 = vmatmul.f32.gmra.mxu0 %v1062
      %v1143 = vpop.f32.mrf.mxu0
      %v1144 = vadd.f32 0.0, %v1143
      %1145 = vmatmul.f32.gmra.mxu0 %v1063
      %v1146 = vpop.f32.mrf.mxu0
      %v1147 = vadd.f32 0.0, %v1146
      %1148 = vmatmul.f32.gmra.mxu0 %v1064
      %v1149 = vpop.f32.mrf.mxu0
      %v1150 = vadd.f32 0.0, %v1149
      %1151 = vmatmul.f32.gmra.mxu0 %v1065
      %v1152 = vpop.f32.mrf.mxu0
      %v1153 = vadd.f32 0.0, %v1152
      %1154 = vmatmul.f32.gmra.mxu0 %v1066
      %v1155 = vpop.f32.mrf.mxu0
      %v1156 = vadd.f32 0.0, %v1155
      %1157 = vmatmul.f32.gmra.mxu0 %v1067
      %v1158 = vpop.f32.mrf.mxu0
      %v1159 = vadd.f32 0.0, %v1158
      %1160 = vmatmul.f32.gmra.mxu0 %v1068
      %v1161 = vpop.f32.mrf.mxu0
      %v1162 = vadd.f32 0.0, %v1161
      %1163 = vmatmul.f32.gmra.mxu0 %v1069
      %v1164 = vpop.f32.mrf.mxu0
      %v1165 = vadd.f32 0.0, %v1164
      %1166 = vmatmul.f32.gmra.mxu0 %v1070
      %v1167 = vpop.f32.mrf.mxu0
      %v1168 = vadd.f32 0.0, %v1167
      %1169 = vmatmul.f32.gmra.mxu0 %v1071
      %v1170 = vpop.f32.mrf.mxu0
      %v1171 = vadd.f32 0.0, %v1170
      %1172 = vmatmul.f32.gmra.mxu0 %v1072
      %v1173 = vpop.f32.mrf.mxu0
      %v1174 = vadd.f32 0.0, %v1173
      %1175 = vmatmul.f32.gmra.mxu0 %v1073
      %v1176 = vpop.f32.mrf.mxu0
      %v1177 = vadd.f32 0.0, %v1176
      %1178 = vmatmul.f32.gmra.mxu0 %v1074
      %v1179 = vpop.f32.mrf.mxu0
      %v1180 = vadd.f32 0.0, %v1179
      %1181 = vmatmul.f32.gmra.mxu0 %v1075
      %v1182 = vpop.f32.mrf.mxu0
      %v1183 = vadd.f32 0.0, %v1182
      %1184 = vmatmul.f32.gmra.mxu0 %v1076
      %v1185 = vpop.f32.mrf.mxu0
      %v1186 = vadd.f32 0.0, %v1185
      %1187 = vmatmul.f32.gmra.mxu0 %v1077
      %v1188 = vpop.f32.mrf.mxu0
      %v1189 = vadd.f32 0.0, %v1188
      %1190 = vmatmul.f32.gmra.mxu0 %v1078
      %v1191 = vpop.f32.mrf.mxu0
      %v1192 = vadd.f32 0.0, %v1191
      %1193 = vmatmul.f32.gmra.mxu0 %v1079
      %v1194 = vpop.f32.mrf.mxu0
      %v1195 = vadd.f32 0.0, %v1194
      %1196 = vmatmul.f32.gmra.mxu0 %v1080
      %v1197 = vpop.f32.mrf.mxu0
      %v1198 = vadd.f32 0.0, %v1197
      %1199 = vmatmul.f32.gmra.mxu0 %v1081
      %v1200 = vpop.f32.mrf.mxu0
      %v1201 = vadd.f32 0.0, %v1200
      %1202 = vmatmul.f32.gmra.mxu0 %v1082
      %v1203 = vpop.f32.mrf.mxu0
      %v1204 = vadd.f32 0.0, %v1203
      %1205 = vmatmul.f32.gmra.mxu0 %v1083
      %v1206 = vpop.f32.mrf.mxu0
      %v1207 = vadd.f32 0.0, %v1206
      %1208 = vmatmul.f32.gmra.mxu0 %v1084
      %v1209 = vpop.f32.mrf.mxu0
      %v1210 = vadd.f32 0.0, %v1209
      %1211 = vmatmul.f32.gmra.mxu0 %v1085
      %v1212 = vpop.f32.mrf.mxu0
      %v1213 = vadd.f32 0.0, %v1212
      %1214 = vdwg.mxu0
      %1215 = vrot.lane.b32.xlu0 %v1120, 64
      %v1216 = vpop.permute.xlu0 %1215
      %1217 = vrot.lane.b32.xlu0 %v1123, 64
      %v1218 = vpop.permute.xlu0 %1217
      %1219 = vrot.lane.b32.xlu0 %v1126, 64
      %v1220 = vpop.permute.xlu0 %1219
      %1221 = vrot.lane.b32.xlu0 %v1129, 64
      %v1222 = vpop.permute.xlu0 %1221
      %1223 = vrot.lane.b32.xlu0 %v1132, 64
      %v1224 = vpop.permute.xlu0 %1223
      %1225 = vrot.lane.b32.xlu0 %v1135, 64
      %v1226 = vpop.permute.xlu0 %1225
      %1227 = vrot.lane.b32.xlu0 %v1138, 64
      %v1228 = vpop.permute.xlu0 %1227
      %1229 = vrot.lane.b32.xlu0 %v1141, 64
      %v1230 = vpop.permute.xlu0 %1229
      %1231 = vrot.lane.b32.xlu0 %v1144, 64
      %v1232 = vpop.permute.xlu0 %1231
      %1233 = vrot.lane.b32.xlu0 %v1147, 64
      %v1234 = vpop.permute.xlu0 %1233
      %1235 = vrot.lane.b32.xlu0 %v1150, 64
      %v1236 = vpop.permute.xlu0 %1235
      %1237 = vrot.lane.b32.xlu0 %v1153, 64
      %v1238 = vpop.permute.xlu0 %1237
      %1239 = vrot.lane.b32.xlu0 %v1156, 64
      %v1240 = vpop.permute.xlu0 %1239
      %1241 = vrot.lane.b32.xlu0 %v1159, 64
      %v1242 = vpop.permute.xlu0 %1241
      %1243 = vrot.lane.b32.xlu0 %v1162, 64
      %v1244 = vpop.permute.xlu0 %1243
      %1245 = vrot.lane.b32.xlu0 %v1165, 64
      %v1246 = vpop.permute.xlu0 %1245
      %1247 = vrot.lane.b32.xlu0 %v1168, 64
      %v1248 = vpop.permute.xlu0 %1247
      %1249 = vrot.lane.b32.xlu0 %v1171, 64
      %v1250 = vpop.permute.xlu0 %1249
      %1251 = vrot.lane.b32.xlu0 %v1174, 64
      %v1252 = vpop.permute.xlu0 %1251
      %1253 = vrot.lane.b32.xlu0 %v1177, 64
      %v1254 = vpop.permute.xlu0 %1253
      %1255 = vrot.lane.b32.xlu0 %v1180, 64
      %v1256 = vpop.permute.xlu0 %1255
      %1257 = vrot.lane.b32.xlu0 %v1183, 64
      %v1258 = vpop.permute.xlu0 %1257
      %1259 = vrot.lane.b32.xlu0 %v1186, 64
      %v1260 = vpop.permute.xlu0 %1259
      %1261 = vrot.lane.b32.xlu0 %v1189, 64
      %v1262 = vpop.permute.xlu0 %1261
      %1263 = vrot.lane.b32.xlu0 %v1192, 64
      %v1264 = vpop.permute.xlu0 %1263
      %1265 = vrot.lane.b32.xlu0 %v1195, 64
      %v1266 = vpop.permute.xlu0 %1265
      %1267 = vrot.lane.b32.xlu0 %v1198, 64
      %v1268 = vpop.permute.xlu0 %1267
      %1269 = vrot.lane.b32.xlu0 %v1201, 64
      %v1270 = vpop.permute.xlu0 %1269
      %1271 = vrot.lane.b32.xlu0 %v1204, 64
      %v1272 = vpop.permute.xlu0 %1271
      %1273 = vrot.lane.b32.xlu0 %v1207, 64
      %v1274 = vpop.permute.xlu0 %1273
      %1275 = vrot.lane.b32.xlu0 %v1210, 64
      %v1276 = vpop.permute.xlu0 %1275
      %1277 = vrot.lane.b32.xlu0 %v1213, 64
      %v1278 = vpop.permute.xlu0 %1277
      %v1279 = vmax.f32 %v1120, %v1216
      %v1280 = vmax.f32 %v1123, %v1218
      %v1281 = vmax.f32 %v1126, %v1220
      %v1282 = vmax.f32 %v1129, %v1222
      %v1283 = vmax.f32 %v1132, %v1224
      %v1284 = vmax.f32 %v1135, %v1226
      %v1285 = vmax.f32 %v1138, %v1228
      %v1286 = vmax.f32 %v1141, %v1230
      %v1287 = vmax.f32 %v1144, %v1232
      %v1288 = vmax.f32 %v1147, %v1234
      %v1289 = vmax.f32 %v1150, %v1236
      %v1290 = vmax.f32 %v1153, %v1238
      %v1291 = vmax.f32 %v1156, %v1240
      %v1292 = vmax.f32 %v1159, %v1242
      %v1293 = vmax.f32 %v1162, %v1244
      %v1294 = vmax.f32 %v1165, %v1246
      %v1295 = vmax.f32 %v1168, %v1248
      %v1296 = vmax.f32 %v1171, %v1250
      %v1297 = vmax.f32 %v1174, %v1252
      %v1298 = vmax.f32 %v1177, %v1254
      %v1299 = vmax.f32 %v1180, %v1256
      %v1300 = vmax.f32 %v1183, %v1258
      %v1301 = vmax.f32 %v1186, %v1260
      %v1302 = vmax.f32 %v1189, %v1262
      %v1303 = vmax.f32 %v1192, %v1264
      %v1304 = vmax.f32 %v1195, %v1266
      %v1305 = vmax.f32 %v1198, %v1268
      %v1306 = vmax.f32 %v1201, %v1270
      %v1307 = vmax.f32 %v1204, %v1272
      %v1308 = vmax.f32 %v1207, %v1274
      %v1309 = vmax.f32 %v1210, %v1276
      %v1310 = vmax.f32 %v1213, %v1278
      %v1311 = vld [vmem:[%s4] sm:$0x1]
      %v1313 = vperm.slane %v1311, 0
      %v1315 = vadd.f32 %v1279, %v1313
      %v1316 = vadd.f32 %v1280, %v1313
      %v1317 = vadd.f32 %v1281, %v1313
      %v1318 = vadd.f32 %v1282, %v1313
      %v1319 = vadd.f32 %v1283, %v1313
      %v1320 = vadd.f32 %v1284, %v1313
      %v1321 = vadd.f32 %v1285, %v1313
      %v1322 = vadd.f32 %v1286, %v1313
      %v1323 = vadd.f32 %v1287, %v1313
      %v1324 = vadd.f32 %v1288, %v1313
      %v1325 = vadd.f32 %v1289, %v1313
      %v1326 = vadd.f32 %v1290, %v1313
      %v1327 = vadd.f32 %v1291, %v1313
      %v1328 = vadd.f32 %v1292, %v1313
      %v1329 = vadd.f32 %v1293, %v1313
      %v1330 = vadd.f32 %v1294, %v1313
      %v1331 = vadd.f32 %v1295, %v1313
      %v1332 = vadd.f32 %v1296, %v1313
      %v1333 = vadd.f32 %v1297, %v1313
      %v1334 = vadd.f32 %v1298, %v1313
      %v1335 = vadd.f32 %v1299, %v1313
      %v1336 = vadd.f32 %v1300, %v1313
      %v1337 = vadd.f32 %v1301, %v1313
      %v1338 = vadd.f32 %v1302, %v1313
      %v1339 = vadd.f32 %v1303, %v1313
      %v1340 = vadd.f32 %v1304, %v1313
      %v1341 = vadd.f32 %v1305, %v1313
      %v1342 = vadd.f32 %v1306, %v1313
      %v1343 = vadd.f32 %v1307, %v1313
      %v1344 = vadd.f32 %v1308, %v1313
      %v1345 = vadd.f32 %v1309, %v1313
      %v1346 = vadd.f32 %v1310, %v1313
      %v1347 = vmax.f32 %v1315, 0.0
      %v1348 = vmax.f32 %v1316, 0.0
      %v1349 = vmax.f32 %v1317, 0.0
      %v1350 = vmax.f32 %v1318, 0.0
      %v1351 = vmax.f32 %v1319, 0.0
      %v1352 = vmax.f32 %v1320, 0.0
      %v1353 = vmax.f32 %v1321, 0.0
      %v1354 = vmax.f32 %v1322, 0.0
      %v1355 = vmax.f32 %v1323, 0.0
      %v1356 = vmax.f32 %v1324, 0.0
      %v1357 = vmax.f32 %v1325, 0.0
      %v1358 = vmax.f32 %v1326, 0.0
      %v1359 = vmax.f32 %v1327, 0.0
      %v1360 = vmax.f32 %v1328, 0.0
      %v1361 = vmax.f32 %v1329, 0.0
      %v1362 = vmax.f32 %v1330, 0.0
      %v1363 = vmax.f32 %v1331, 0.0
      %v1364 = vmax.f32 %v1332, 0.0
      %v1365 = vmax.f32 %v1333, 0.0
      %v1366 = vmax.f32 %v1334, 0.0
      %v1367 = vmax.f32 %v1335, 0.0
      %v1368 = vmax.f32 %v1336, 0.0
      %v1369 = vmax.f32 %v1337, 0.0
      %v1370 = vmax.f32 %v1338, 0.0
      %v1371 = vmax.f32 %v1339, 0.0
      %v1372 = vmax.f32 %v1340, 0.0
      %v1373 = vmax.f32 %v1341, 0.0
      %v1374 = vmax.f32 %v1342, 0.0
      %v1375 = vmax.f32 %v1343, 0.0
      %v1376 = vmax.f32 %v1344, 0.0
      %v1377 = vmax.f32 %v1345, 0.0
      %v1378 = vmax.f32 %v1346, 0.0
      %v1379 = vld [vmem:[%s5] sm:$0xff]
      %v1380 = vld [vmem:[%s5 + $0x8] sm:$0xff]
      %v1381 = vld [vmem:[%s5 + $0x10] sm:$0xff]
      %v1382 = vld [vmem:[%s5 + $0x18] sm:$0xff]
      %v1383 = vmul.f32 %v1347, %v1379
      %v1384 = vmul.f32 %v1348, %v1380
      %v1385 = vmul.f32 %v1349, %v1381
      %v1386 = vmul.f32 %v1350, %v1382
      %v1387 = vmul.f32 %v1351, %v1379
      %v1388 = vmul.f32 %v1352, %v1380
      %v1389 = vmul.f32 %v1353, %v1381
      %v1390 = vmul.f32 %v1354, %v1382
      %v1391 = vmul.f32 %v1355, %v1379
      %v1392 = vmul.f32 %v1356, %v1380
      %v1393 = vmul.f32 %v1357, %v1381
      %v1394 = vmul.f32 %v1358, %v1382
      %v1395 = vmul.f32 %v1359, %v1379
      %v1396 = vmul.f32 %v1360, %v1380
      %v1397 = vmul.f32 %v1361, %v1381
      %v1398 = vmul.f32 %v1362, %v1382
      %v1399 = vmul.f32 %v1363, %v1379
      %v1400 = vmul.f32 %v1364, %v1380
      %v1401 = vmul.f32 %v1365, %v1381
      %v1402 = vmul.f32 %v1366, %v1382
      %v1403 = vmul.f32 %v1367, %v1379
      %v1404 = vmul.f32 %v1368, %v1380
      %v1405 = vmul.f32 %v1369, %v1381
      %v1406 = vmul.f32 %v1370, %v1382
      %v1407 = vmul.f32 %v1371, %v1379
      %v1408 = vmul.f32 %v1372, %v1380
      %v1409 = vmul.f32 %v1373, %v1381
      %v1410 = vmul.f32 %v1374, %v1382
      %v1411 = vmul.f32 %v1375, %v1379
      %v1412 = vmul.f32 %v1376, %v1380
      %v1413 = vmul.f32 %v1377, %v1381
      %v1414 = vmul.f32 %v1378, %v1382
      %v1415 = vadd.f32 %v1383, %v1384
      %v1416 = vadd.f32 %v1415, %v1385
      %v1417 = vadd.f32 %v1416, %v1386
      %v1418 = vrot.slane %v1417, 4
      %v1419 = vadd.f32 %v1417, %v1418
      %v1420 = vrot.slane %v1419, 2
      %v1421 = vadd.f32 %v1419, %v1420
      %v1422 = vrot.slane %v1421, 1
      %v1423 = vadd.f32 %v1421, %v1422
      %v1424 = vadd.f32 %v1387, %v1388
      %v1425 = vadd.f32 %v1424, %v1389
      %v1426 = vadd.f32 %v1425, %v1390
      %v1427 = vrot.slane %v1426, 4
      %v1428 = vadd.f32 %v1426, %v1427
      %v1429 = vrot.slane %v1428, 2
      %v1430 = vadd.f32 %v1428, %v1429
      %v1431 = vrot.slane %v1430, 1
      %v1432 = vadd.f32 %v1430, %v1431
      %v1433 = vadd.f32 %v1391, %v1392
      %v1434 = vadd.f32 %v1433, %v1393
      %v1435 = vadd.f32 %v1434, %v1394
      %v1436 = vrot.slane %v1435, 4
      %v1437 = vadd.f32 %v1435, %v1436
      %v1438 = vrot.slane %v1437, 2
      %v1439 = vadd.f32 %v1437, %v1438
      %v1440 = vrot.slane %v1439, 1
      %v1441 = vadd.f32 %v1439, %v1440
      %v1442 = vadd.f32 %v1395, %v1396
      %v1443 = vadd.f32 %v1442, %v1397
      %v1444 = vadd.f32 %v1443, %v1398
      %v1445 = vrot.slane %v1444, 4
      %v1446 = vadd.f32 %v1444, %v1445
      %v1447 = vrot.slane %v1446, 2
      %v1448 = vadd.f32 %v1446, %v1447
      %v1449 = vrot.slane %v1448, 1
      %v1450 = vadd.f32 %v1448, %v1449
      %v1451 = vadd.f32 %v1399, %v1400
      %v1452 = vadd.f32 %v1451, %v1401
      %v1453 = vadd.f32 %v1452, %v1402
      %v1454 = vrot.slane %v1453, 4
      %v1455 = vadd.f32 %v1453, %v1454
      %v1456 = vrot.slane %v1455, 2
      %v1457 = vadd.f32 %v1455, %v1456
      %v1458 = vrot.slane %v1457, 1
      %v1459 = vadd.f32 %v1457, %v1458
      %v1460 = vadd.f32 %v1403, %v1404
      %v1461 = vadd.f32 %v1460, %v1405
      %v1462 = vadd.f32 %v1461, %v1406
      %v1463 = vrot.slane %v1462, 4
      %v1464 = vadd.f32 %v1462, %v1463
      %v1465 = vrot.slane %v1464, 2
      %v1466 = vadd.f32 %v1464, %v1465
      %v1467 = vrot.slane %v1466, 1
      %v1468 = vadd.f32 %v1466, %v1467
      %v1469 = vadd.f32 %v1407, %v1408
      %v1470 = vadd.f32 %v1469, %v1409
      %v1471 = vadd.f32 %v1470, %v1410
      %v1472 = vrot.slane %v1471, 4
      %v1473 = vadd.f32 %v1471, %v1472
      %v1474 = vrot.slane %v1473, 2
      %v1475 = vadd.f32 %v1473, %v1474
      %v1476 = vrot.slane %v1475, 1
      %v1477 = vadd.f32 %v1475, %v1476
      %v1478 = vadd.f32 %v1411, %v1412
      %v1479 = vadd.f32 %v1478, %v1413
      %v1480 = vadd.f32 %v1479, %v1414
      %v1481 = vrot.slane %v1480, 4
      %v1482 = vadd.f32 %v1480, %v1481
      %v1483 = vrot.slane %v1482, 2
      %v1484 = vadd.f32 %v1482, %v1483
      %v1485 = vrot.slane %v1484, 1
      %v1486 = vadd.f32 %v1484, %v1485
      %vm1495 = vcmask 1041409
      %v1496 = vsel %vm1495, %v1432, %v1423
      %vm1497 = vcmask 1042434
      %v1498 = vsel %vm1497, %v1441, %v1496
      %vm1499 = vcmask 1043459
      %v1500 = vsel %vm1499, %v1450, %v1498
      %vm1501 = vcmask 1044484
      %v1502 = vsel %vm1501, %v1459, %v1500
      %vm1503 = vcmask 1045509
      %v1504 = vsel %vm1503, %v1468, %v1502
      %vm1505 = vcmask 1046534
      %v1506 = vsel %vm1505, %v1477, %v1504
      %vm1507 = vcmask 1047559
      %v1508 = vsel %vm1507, %v1486, %v1506
      %vm1510 = vcmask 523264
      %v1511 = vsel %vm1510, %v1508, 0.0
      %1512 = vadd.xlane.f32.xlu0 %v1511
      %v1513 = vpop.xlane.xlu0 %1512
      %1514 = vrot.lane.b32.xlu0 %v1508, 64
      %v1515 = vpop.permute.xlu0 %1514
      %v1517 = vsel %vm1510, %v1515, 0.0
      %1518 = vadd.xlane.f32.xlu0 %v1517
      %v1519 = vpop.xlane.xlu0 %1518
      %vm1520 = vcmp.eq.s32.totalorder %v1019, 0
      %v1521 = vsel %vm1520, %v1513, %v1519
      %v1522 = vld [vmem:[%s6] sm:$0x1]
      %v1524 = vperm.slane %v1522, 0
      %v1526 = vadd.f32 %v1521, %v1524
      %vm1527 = vcmask 15360
      %1528 = vst.msk [vmem:[%s278] sm:$0xff] %vm1527, %v1526
      %p1529 = scmp.lt.s32.totalorder %s18, 1
      %s1530 = scalar_select %p1529, %s18, 1
      %s1531 = smul.addr %s1530, 8
      %s1532 = scalar_lea.vmem %s7, %s1531
      // Predicated region
      $region49: #{tpu_custom_call.1} parent=47 // pred_check
        %p1533 = pneg %p188
      $region50: #{tpu_custom_call.1} parent=47 // pred_check_branch
        %1535 = sbr.rel (%p1533) target = $region52
      $region51: #{tpu_custom_call.1} parent=47 // pred_region
        _
      $region52: #{tpu_custom_call.1} parent=47 // pred_fallthru
        _
    $region48: #{tpu_custom_call.1} parent=5 // pred_fallthru
      _
    %p1536 = scmp.le.s32.totalorder 2, %s13
    // Predicated region
    $region53: #{tpu_custom_call.1} parent=5 // pred_check
      %p1537 = pneg %p1536
    $region54: #{tpu_custom_call.1} parent=5 // pred_check_branch
      %1539 = sbr.rel (%p1537) target = $region56
    $region55: #{tpu_custom_call.1} parent=5 // pred_region
      %s1540 = ssub.s32 %s13, 2
      // Predicated region
      $region57: #{tpu_custom_call.1} parent=55 // pred_check
        %p1541 = pneg %p194
      $region58: #{tpu_custom_call.1} parent=55 // pred_check_branch
        %1543 = sbr.rel (%p1541) target = $region60
      $region59: #{tpu_custom_call.1} parent=55 // pred_region
        %p1544 = scmp.lt.s32.totalorder %s19, 1
        %s1545 = scalar_select %p1544, %s19, 1
        %s1546 = smul.addr %s1545, 8
        %s1547 = scalar_lea.vmem %s7, %s1546
      $region60: #{tpu_custom_call.1} parent=55 // pred_fallthru
        _
    $region56: #{tpu_custom_call.1} parent=5 // pred_fallthru
      _
  $region6: #{tpu_custom_call.1} parent=0 // loop_footer
    %s17 = sadd.s32 1, %s13
  $region7: #{tpu_custom_call.1} parent=0 // loop_footer_branch
    %12 = sbr.rel target = $region3
  $region8: #{tpu_custom_call.1} parent=0 // loop_exit
    _

</llo_original>
